<compile_context>
chip_gen: v7x
topology: tpu7x:2x2x1
jax: 0.10.0
libtpu: 0.0.40
codegen_flags: <defaults>
</compile_context>

<pallas_src>
import jax
import jax.numpy as jnp
from jax.experimental import pallas as pl
from jax.experimental.pallas import tpu as pltpu


def _graph_comb_kernel(x_ref, y_ref, w_ref, b_ref, o_ref):
    # x_ref / y_ref : [b_tile, N, D]   (this grid step's samples)
    # w_ref         : [4D, D]          (resident: [Wx^T ; Wy^T ; Wc^T])
    # b_ref         : [1, D]           (resident bias)
    # o_ref         : [N, b_tile*D]    (lane-dense packed output slab)
    bt, n, d = x_ref.shape
    w = w_ref[...]
    wx_t = w[:d]                  # static sublane views of the stacked weights
    wy_t = w[d:2 * d]
    wc1 = w[2 * d:3 * d]          # multiplies h1
    wc2 = w[3 * d:]               # multiplies h2
    bias = b_ref[...]             # [1, D], broadcasts over N

    outs = []
    for i in range(bt):           # static unroll over samples in this block
        h1 = jnp.tanh(jnp.dot(x_ref[i], wx_t, preferred_element_type=jnp.float32))
        h2 = jnp.tanh(jnp.dot(y_ref[i], wy_t, preferred_element_type=jnp.float32))
        out = (jnp.dot(h1, wc1, preferred_element_type=jnp.float32)
               + jnp.dot(h2, wc2, preferred_element_type=jnp.float32)
               + bias)
        # Per-sample Frobenius norm (matches out.norm(2) over the whole sample).
        out = out * jax.lax.rsqrt(jnp.sum(out * out))
        outs.append(out)

    packed = outs[0] if bt == 1 else jnp.concatenate(outs, axis=-1)
    o_ref[...] = packed.astype(o_ref.dtype)


def prepare_graph_comb_params(wx, wy, wc, bc):
    """One-time parameter prep (hoisted out of the per-call path).

    wx, wy: [D, D] PyTorch Linear weights (out x in); wc: [D, 2D]; bc: [D].
    Returns:
      w_all : [4D, D]  stacked [Wx^T ; Wy^T ; Wc^T]  -> single weight DMA
      b2d   : [1, D]   bias, 2-D for TPU layout
    """
    D = wx.shape[0]
    w_all = jnp.concatenate([wx.T, wy.T, wc.T], axis=0)   # [4D, D]
    b2d = bc.reshape(1, D)
    return w_all, b2d


def _pick_b_tile(B, D, target_lanes=128):
    """Largest divisor of B not exceeding the samples needed for >=128 lanes."""
    want = max(1, target_lanes // D)
    bt = min(want, B)
    while B % bt:
        bt -= 1
    return bt


@jax.jit
def graph_comb_forward(x, y, w_all, b2d):
    """x, y: [B, N, D] (B independent Graph_Comb calls); returns [B, N, D]."""
    B, N, D = x.shape
    b_tile = _pick_b_tile(B, D)
    n_blocks = B // b_tile

    out_packed = pl.pallas_call(
        _graph_comb_kernel,
        out_shape=jax.ShapeDtypeStruct((N, B * D), x.dtype),
        grid=(n_blocks,),
        in_specs=[
            pl.BlockSpec((b_tile, N, D), lambda b: (b, 0, 0)),   # x samples (stream)
            pl.BlockSpec((b_tile, N, D), lambda b: (b, 0, 0)),   # y samples (stream)
            pl.BlockSpec((4 * D, D), lambda b: (0, 0)),          # stacked weights (resident)
            pl.BlockSpec((1, D), lambda b: (0, 0)),              # bias (resident)
        ],
        out_specs=pl.BlockSpec((N, b_tile * D), lambda b: (0, b)),  # lane-dense slab
        compiler_params=pltpu.CompilerParams(
            dimension_semantics=("parallel",)),                 # v7x: shard over 2 TCs
    )(x, y, w_all, b2d)

    # Un-pack: out_packed[n, s*D + d] == result[s, n, d]   (s = global sample).
    return jnp.transpose(out_packed.reshape(N, B, D), (1, 0, 2))


def _reference(x, y, wx, wy, wc, bc):
    def one(xb, yb):
        h1 = jnp.tanh(xb @ wx.T)
        h2 = jnp.tanh(yb @ wy.T)
        out = jnp.concatenate([h1, h2], axis=1) @ wc.T + bc
        return out / jnp.linalg.norm(out)
    return jax.vmap(one)(x, y)


if __name__ == "__main__":
    key = jax.random.PRNGKey(0)
    B, N, D = 8, 8, 32              # 8 batched calls, 8 nodes each, embed_dim=32
    k = jax.random.split(key, 6)

    x = jax.random.normal(k[0], (B, N, D), dtype=jnp.float32)
    y = jax.random.normal(k[1], (B, N, D), dtype=jnp.float32)

    # Deterministic parameter init (uniform, PyTorch-Linear-like scale).
    bound_d = 1.0 / (D ** 0.5)
    bound_2d = 1.0 / ((2 * D) ** 0.5)
    wx = jax.random.uniform(k[2], (D, D), jnp.float32, -bound_d, bound_d)
    wy = jax.random.uniform(k[3], (D, D), jnp.float32, -bound_d, bound_d)
    wc = jax.random.uniform(k[4], (D, 2 * D), jnp.float32, -bound_2d, bound_2d)
    bc = jax.random.uniform(k[5], (D,), jnp.float32, -bound_2d, bound_2d)

    # One-time weight stacking (static model params) — not in the per-call path.
    w_all, b2d = prepare_graph_comb_params(wx, wy, wc, bc)
    w_all, b2d = jax.block_until_ready((w_all, b2d))

    out = graph_comb_forward(x, y, w_all, b2d)
    jax.block_until_ready(out)

    ref = _reference(x, y, wx, wy, wc, bc)
    assert out.shape == ref.shape, "shape mismatch vs reference"
    assert jnp.allclose(out, ref, atol=1e-5, rtol=1e-5), "mismatch vs reference"

    print("KERNEL_OK")
</pallas_src>

<mosaic_0001>
module attributes {stable_mosaic.version = 11 : i64} {
  func.func @_graph_comb_kernel(%arg0: i32, %arg1: memref<4x8x32xf32, #tpu.memory_space<vmem>>, %arg2: memref<4x8x32xf32, #tpu.memory_space<vmem>>, %arg3: memref<128x32xf32, #tpu.memory_space<vmem>>, %arg4: memref<1x32xf32, #tpu.memory_space<vmem>>, %arg5: memref<8x128xf32, #tpu.memory_space<vmem>>) attributes {dimension_semantics = [#tpu.dimension_semantics<parallel>], iteration_bounds = array<i64: 2>, scalar_prefetch = 0 : i64, scratch_operands = 0 : i64, tpu.core_type = #tpu.core_type<tc>, window_params = [{transform_indices = @transform_0, window_bounds = array<i64: 4, 8, 32>}, {transform_indices = @transform_1, window_bounds = array<i64: 4, 8, 32>}, {pipeline_mode = #tpu.pipeline_mode<synchronous>, transform_indices = @transform_2, window_bounds = array<i64: 128, 32>}, {pipeline_mode = #tpu.pipeline_mode<synchronous>, transform_indices = @transform_3, window_bounds = array<i64: 1, 32>}, {transform_indices = @transform_4, window_bounds = array<i64: 8, 128>}]} {
    %c0 = arith.constant 0 : index
    %c0_0 = arith.constant 0 : index
    %0 = vector.load %arg3[%c0, %c0_0] : memref<128x32xf32, #tpu.memory_space<vmem>>, vector<128x32xf32>
    %1 = vector.extract_strided_slice %0 {offsets = [0, 0], sizes = [32, 32], strides = [1, 1]} : vector<128x32xf32> to vector<32x32xf32>
    %2 = vector.extract_strided_slice %0 {offsets = [32, 0], sizes = [32, 32], strides = [1, 1]} : vector<128x32xf32> to vector<32x32xf32>
    %3 = vector.extract_strided_slice %0 {offsets = [64, 0], sizes = [32, 32], strides = [1, 1]} : vector<128x32xf32> to vector<32x32xf32>
    %4 = vector.extract_strided_slice %0 {offsets = [96, 0], sizes = [32, 32], strides = [1, 1]} : vector<128x32xf32> to vector<32x32xf32>
    %c0_1 = arith.constant 0 : index
    %c0_2 = arith.constant 0 : index
    %5 = vector.load %arg4[%c0_1, %c0_2] : memref<1x32xf32, #tpu.memory_space<vmem>>, vector<1x32xf32>
    %c0_3 = arith.constant 0 : index
    %c0_4 = arith.constant 0 : index
    %c0_5 = arith.constant 0 : index
    %6 = vector.load %arg1[%c0_3, %c0_4, %c0_5] : memref<4x8x32xf32, #tpu.memory_space<vmem>>, vector<1x8x32xf32>
    %7 = vector.shape_cast %6 : vector<1x8x32xf32> to vector<8x32xf32>
    %cst = arith.constant dense<0.000000e+00> : vector<8x32xf32>
    %8 = tpu.matmul %7, %1, %cst {dimension_numbers = #tpu.dot_dimension_numbers<[1], [0], [0], [1], [0, 0, 1, 1], [], []>} : vector<8x32xf32>, vector<32x32xf32>, vector<8x32xf32> -> vector<8x32xf32>
    %9 = math.tanh %8 : vector<8x32xf32>
    %c0_6 = arith.constant 0 : index
    %c0_7 = arith.constant 0 : index
    %c0_8 = arith.constant 0 : index
    %10 = vector.load %arg2[%c0_6, %c0_7, %c0_8] : memref<4x8x32xf32, #tpu.memory_space<vmem>>, vector<1x8x32xf32>
    %11 = vector.shape_cast %10 : vector<1x8x32xf32> to vector<8x32xf32>
    %cst_9 = arith.constant dense<0.000000e+00> : vector<8x32xf32>
    %12 = tpu.matmul %11, %2, %cst_9 {dimension_numbers = #tpu.dot_dimension_numbers<[1], [0], [0], [1], [0, 0, 1, 1], [], []>} : vector<8x32xf32>, vector<32x32xf32>, vector<8x32xf32> -> vector<8x32xf32>
    %13 = math.tanh %12 : vector<8x32xf32>
    %cst_10 = arith.constant dense<0.000000e+00> : vector<8x32xf32>
    %14 = tpu.matmul %9, %3, %cst_10 {dimension_numbers = #tpu.dot_dimension_numbers<[1], [0], [0], [1], [0, 0, 1, 1], [], []>} : vector<8x32xf32>, vector<32x32xf32>, vector<8x32xf32> -> vector<8x32xf32>
    %cst_11 = arith.constant dense<0.000000e+00> : vector<8x32xf32>
    %15 = tpu.matmul %13, %4, %cst_11 {dimension_numbers = #tpu.dot_dimension_numbers<[1], [0], [0], [1], [0, 0, 1, 1], [], []>} : vector<8x32xf32>, vector<32x32xf32>, vector<8x32xf32> -> vector<8x32xf32>
    %16 = arith.addf %14, %15 : vector<8x32xf32>
    %17 = vector.broadcast %5 : vector<1x32xf32> to vector<8x32xf32>
    %18 = arith.addf %16, %17 : vector<8x32xf32>
    %19 = arith.mulf %18, %18 : vector<8x32xf32>
    %20 = vector.shape_cast %19 : vector<8x32xf32> to vector<1x8x32xf32>
    %cst_12 = arith.constant dense<0.000000e+00> : vector<1xf32>
    %21 = vector.multi_reduction <add>, %20, %cst_12 [1, 2] : vector<1x8x32xf32> to vector<1xf32>
    %22 = vector.shape_cast %21 : vector<1xf32> to vector<1x1x1xf32>
    %23 = vector.extract %22[0, 0, 0] : f32 from vector<1x1x1xf32>
    %24 = math.rsqrt %23 : f32
    %25 = vector.broadcast %24 : f32 to vector<8x32xf32>
    %26 = arith.mulf %18, %25 : vector<8x32xf32>
    %c1 = arith.constant 1 : index
    %c0_13 = arith.constant 0 : index
    %c0_14 = arith.constant 0 : index
    %27 = vector.load %arg1[%c1, %c0_13, %c0_14] : memref<4x8x32xf32, #tpu.memory_space<vmem>>, vector<1x8x32xf32>
    %28 = vector.shape_cast %27 : vector<1x8x32xf32> to vector<8x32xf32>
    %cst_15 = arith.constant dense<0.000000e+00> : vector<8x32xf32>
    %29 = tpu.matmul %28, %1, %cst_15 {dimension_numbers = #tpu.dot_dimension_numbers<[1], [0], [0], [1], [0, 0, 1, 1], [], []>} : vector<8x32xf32>, vector<32x32xf32>, vector<8x32xf32> -> vector<8x32xf32>
    %30 = math.tanh %29 : vector<8x32xf32>
    %c1_16 = arith.constant 1 : index
    %c0_17 = arith.constant 0 : index
    %c0_18 = arith.constant 0 : index
    %31 = vector.load %arg2[%c1_16, %c0_17, %c0_18] : memref<4x8x32xf32, #tpu.memory_space<vmem>>, vector<1x8x32xf32>
    %32 = vector.shape_cast %31 : vector<1x8x32xf32> to vector<8x32xf32>
    %cst_19 = arith.constant dense<0.000000e+00> : vector<8x32xf32>
    %33 = tpu.matmul %32, %2, %cst_19 {dimension_numbers = #tpu.dot_dimension_numbers<[1], [0], [0], [1], [0, 0, 1, 1], [], []>} : vector<8x32xf32>, vector<32x32xf32>, vector<8x32xf32> -> vector<8x32xf32>
    %34 = math.tanh %33 : vector<8x32xf32>
    %cst_20 = arith.constant dense<0.000000e+00> : vector<8x32xf32>
    %35 = tpu.matmul %30, %3, %cst_20 {dimension_numbers = #tpu.dot_dimension_numbers<[1], [0], [0], [1], [0, 0, 1, 1], [], []>} : vector<8x32xf32>, vector<32x32xf32>, vector<8x32xf32> -> vector<8x32xf32>
    %cst_21 = arith.constant dense<0.000000e+00> : vector<8x32xf32>
    %36 = tpu.matmul %34, %4, %cst_21 {dimension_numbers = #tpu.dot_dimension_numbers<[1], [0], [0], [1], [0, 0, 1, 1], [], []>} : vector<8x32xf32>, vector<32x32xf32>, vector<8x32xf32> -> vector<8x32xf32>
    %37 = arith.addf %35, %36 : vector<8x32xf32>
    %38 = vector.broadcast %5 : vector<1x32xf32> to vector<8x32xf32>
    %39 = arith.addf %37, %38 : vector<8x32xf32>
    %40 = arith.mulf %39, %39 : vector<8x32xf32>
    %41 = vector.shape_cast %40 : vector<8x32xf32> to vector<1x8x32xf32>
    %cst_22 = arith.constant dense<0.000000e+00> : vector<1xf32>
    %42 = vector.multi_reduction <add>, %41, %cst_22 [1, 2] : vector<1x8x32xf32> to vector<1xf32>
    %43 = vector.shape_cast %42 : vector<1xf32> to vector<1x1x1xf32>
    %44 = vector.extract %43[0, 0, 0] : f32 from vector<1x1x1xf32>
    %45 = math.rsqrt %44 : f32
    %46 = vector.broadcast %45 : f32 to vector<8x32xf32>
    %47 = arith.mulf %39, %46 : vector<8x32xf32>
    %c2 = arith.constant 2 : index
    %c0_23 = arith.constant 0 : index
    %c0_24 = arith.constant 0 : index
    %48 = vector.load %arg1[%c2, %c0_23, %c0_24] : memref<4x8x32xf32, #tpu.memory_space<vmem>>, vector<1x8x32xf32>
    %49 = vector.shape_cast %48 : vector<1x8x32xf32> to vector<8x32xf32>
    %cst_25 = arith.constant dense<0.000000e+00> : vector<8x32xf32>
    %50 = tpu.matmul %49, %1, %cst_25 {dimension_numbers = #tpu.dot_dimension_numbers<[1], [0], [0], [1], [0, 0, 1, 1], [], []>} : vector<8x32xf32>, vector<32x32xf32>, vector<8x32xf32> -> vector<8x32xf32>
    %51 = math.tanh %50 : vector<8x32xf32>
    %c2_26 = arith.constant 2 : index
    %c0_27 = arith.constant 0 : index
    %c0_28 = arith.constant 0 : index
    %52 = vector.load %arg2[%c2_26, %c0_27, %c0_28] : memref<4x8x32xf32, #tpu.memory_space<vmem>>, vector<1x8x32xf32>
    %53 = vector.shape_cast %52 : vector<1x8x32xf32> to vector<8x32xf32>
    %cst_29 = arith.constant dense<0.000000e+00> : vector<8x32xf32>
    %54 = tpu.matmul %53, %2, %cst_29 {dimension_numbers = #tpu.dot_dimension_numbers<[1], [0], [0], [1], [0, 0, 1, 1], [], []>} : vector<8x32xf32>, vector<32x32xf32>, vector<8x32xf32> -> vector<8x32xf32>
    %55 = math.tanh %54 : vector<8x32xf32>
    %cst_30 = arith.constant dense<0.000000e+00> : vector<8x32xf32>
    %56 = tpu.matmul %51, %3, %cst_30 {dimension_numbers = #tpu.dot_dimension_numbers<[1], [0], [0], [1], [0, 0, 1, 1], [], []>} : vector<8x32xf32>, vector<32x32xf32>, vector<8x32xf32> -> vector<8x32xf32>
    %cst_31 = arith.constant dense<0.000000e+00> : vector<8x32xf32>
    %57 = tpu.matmul %55, %4, %cst_31 {dimension_numbers = #tpu.dot_dimension_numbers<[1], [0], [0], [1], [0, 0, 1, 1], [], []>} : vector<8x32xf32>, vector<32x32xf32>, vector<8x32xf32> -> vector<8x32xf32>
    %58 = arith.addf %56, %57 : vector<8x32xf32>
    %59 = vector.broadcast %5 : vector<1x32xf32> to vector<8x32xf32>
    %60 = arith.addf %58, %59 : vector<8x32xf32>
    %61 = arith.mulf %60, %60 : vector<8x32xf32>
    %62 = vector.shape_cast %61 : vector<8x32xf32> to vector<1x8x32xf32>
    %cst_32 = arith.constant dense<0.000000e+00> : vector<1xf32>
    %63 = vector.multi_reduction <add>, %62, %cst_32 [1, 2] : vector<1x8x32xf32> to vector<1xf32>
    %64 = vector.shape_cast %63 : vector<1xf32> to vector<1x1x1xf32>
    %65 = vector.extract %64[0, 0, 0] : f32 from vector<1x1x1xf32>
    %66 = math.rsqrt %65 : f32
    %67 = vector.broadcast %66 : f32 to vector<8x32xf32>
    %68 = arith.mulf %60, %67 : vector<8x32xf32>
    %c3 = arith.constant 3 : index
    %c0_33 = arith.constant 0 : index
    %c0_34 = arith.constant 0 : index
    %69 = vector.load %arg1[%c3, %c0_33, %c0_34] : memref<4x8x32xf32, #tpu.memory_space<vmem>>, vector<1x8x32xf32>
    %70 = vector.shape_cast %69 : vector<1x8x32xf32> to vector<8x32xf32>
    %cst_35 = arith.constant dense<0.000000e+00> : vector<8x32xf32>
    %71 = tpu.matmul %70, %1, %cst_35 {dimension_numbers = #tpu.dot_dimension_numbers<[1], [0], [0], [1], [0, 0, 1, 1], [], []>} : vector<8x32xf32>, vector<32x32xf32>, vector<8x32xf32> -> vector<8x32xf32>
    %72 = math.tanh %71 : vector<8x32xf32>
    %c3_36 = arith.constant 3 : index
    %c0_37 = arith.constant 0 : index
    %c0_38 = arith.constant 0 : index
    %73 = vector.load %arg2[%c3_36, %c0_37, %c0_38] : memref<4x8x32xf32, #tpu.memory_space<vmem>>, vector<1x8x32xf32>
    %74 = vector.shape_cast %73 : vector<1x8x32xf32> to vector<8x32xf32>
    %cst_39 = arith.constant dense<0.000000e+00> : vector<8x32xf32>
    %75 = tpu.matmul %74, %2, %cst_39 {dimension_numbers = #tpu.dot_dimension_numbers<[1], [0], [0], [1], [0, 0, 1, 1], [], []>} : vector<8x32xf32>, vector<32x32xf32>, vector<8x32xf32> -> vector<8x32xf32>
    %76 = math.tanh %75 : vector<8x32xf32>
    %cst_40 = arith.constant dense<0.000000e+00> : vector<8x32xf32>
    %77 = tpu.matmul %72, %3, %cst_40 {dimension_numbers = #tpu.dot_dimension_numbers<[1], [0], [0], [1], [0, 0, 1, 1], [], []>} : vector<8x32xf32>, vector<32x32xf32>, vector<8x32xf32> -> vector<8x32xf32>
    %cst_41 = arith.constant dense<0.000000e+00> : vector<8x32xf32>
    %78 = tpu.matmul %76, %4, %cst_41 {dimension_numbers = #tpu.dot_dimension_numbers<[1], [0], [0], [1], [0, 0, 1, 1], [], []>} : vector<8x32xf32>, vector<32x32xf32>, vector<8x32xf32> -> vector<8x32xf32>
    %79 = arith.addf %77, %78 : vector<8x32xf32>
    %80 = vector.broadcast %5 : vector<1x32xf32> to vector<8x32xf32>
    %81 = arith.addf %79, %80 : vector<8x32xf32>
    %82 = arith.mulf %81, %81 : vector<8x32xf32>
    %83 = vector.shape_cast %82 : vector<8x32xf32> to vector<1x8x32xf32>
    %cst_42 = arith.constant dense<0.000000e+00> : vector<1xf32>
    %84 = vector.multi_reduction <add>, %83, %cst_42 [1, 2] : vector<1x8x32xf32> to vector<1xf32>
    %85 = vector.shape_cast %84 : vector<1xf32> to vector<1x1x1xf32>
    %86 = vector.extract %85[0, 0, 0] : f32 from vector<1x1x1xf32>
    %87 = math.rsqrt %86 : f32
    %88 = vector.broadcast %87 : f32 to vector<8x32xf32>
    %89 = arith.mulf %81, %88 : vector<8x32xf32>
    %90 = tpu.concatenate %26, %47, %68, %89 in 1 : vector<8x32xf32>, vector<8x32xf32>, vector<8x32xf32>, vector<8x32xf32> -> vector<8x128xf32>
    %c0_43 = arith.constant 0 : index
    %c0_44 = arith.constant 0 : index
    %91 = vector.load %arg5[%c0_43, %c0_44] : memref<8x128xf32, #tpu.memory_space<vmem>>, vector<8x128xf32>
    tpu.vector_store %arg5[%c0_43, %c0_44], %90 {strides = array<i32>} : memref<8x128xf32, #tpu.memory_space<vmem>>, vector<8x128xf32>,
    return
  }
  func.func @transform_0(%arg0: i32) -> (i32, i32, i32) {
    %c0_i32 = arith.constant 0 : i32
    %c0_i32_0 = arith.constant 0 : i32
    %c0_i32_1 = arith.constant 0 : i32
    return %arg0, %c0_i32, %c0_i32_0 : i32, i32, i32
  }
  func.func @transform_1(%arg0: i32) -> (i32, i32, i32) {
    %c0_i32 = arith.constant 0 : i32
    %c0_i32_0 = arith.constant 0 : i32
    %c0_i32_1 = arith.constant 0 : i32
    return %arg0, %c0_i32, %c0_i32_0 : i32, i32, i32
  }
  func.func @transform_2(%arg0: i32) -> (i32, i32) {
    %c0_i32 = arith.constant 0 : i32
    %c0_i32_0 = arith.constant 0 : i32
    %c0_i32_1 = arith.constant 0 : i32
    return %c0_i32, %c0_i32_0 : i32, i32
  }
  func.func @transform_3(%arg0: i32) -> (i32, i32) {
    %c0_i32 = arith.constant 0 : i32
    %c0_i32_0 = arith.constant 0 : i32
    %c0_i32_1 = arith.constant 0 : i32
    return %c0_i32, %c0_i32_0 : i32, i32
  }
  func.func @transform_4(%arg0: i32) -> (i32, i32) {
    %c0_i32 = arith.constant 0 : i32
    %c0_i32_0 = arith.constant 0 : i32
    return %c0_i32, %arg0 : i32, i32
  }
}

</mosaic_0001>

<llo_original>
// kernel: graph_comb_forward.1
$region0: #{graph_comb_forward.1}
  #allocation0 [shape = 'u32[]', space=smem, size = 0x4, offset = 0x4, fixed_abs, tag = 'smem constant byte address 0x4 - core index']
  #allocation1 [shape = 'u32[144,128]{1,0:T(1,128)}', space=vmem, size = 0x12000, scoped, tag = 'internal scratch']
  %s0 = inlined_call_operand.vmem [shape: f32[8,8,32], index: 0, kind: input, shape index: {}]
  %s1 = inlined_call_operand.vmem [shape: f32[8,8,32], index: 1, kind: input, shape index: {}]
  %s2 = inlined_call_operand.vmem [shape: f32[128,32], index: 2, kind: input, shape index: {}]
  %s3 = inlined_call_operand.vmem [shape: f32[1,32], index: 3, kind: input, shape index: {}]
  %s4 = inlined_call_operand.vmem [shape: f32[8,256], index: 4, kind: output, shape index: {}]
  %s5 = sld [smem:[#allocation0]]
  $region49: #{graph_comb_forward.1} parent=0
    _
  %s7 = ssub.s32 1, %s5
  %s8 = scalar_select 0, %s7, %s5
  loop: start=0, step=1, limit=4
  $region2: #{graph_comb_forward.1} parent=0 // loop_pre_header
    _
  $region3: #{graph_comb_forward.1} parent=0 // loop_header
    %s10 = sphi 0, %s14
    %p11 = scmp.ge.s32.totalorder %s10, 4
    %s20 = sphi 0, %s22
    %s23 = sphi 0, %s20
    %s24 = sphi 0, %s23
    %s40 = sphi 0, %s24
    %s46 = sphi 0, %s48
    %s49 = sphi 0, %s46
    %s50 = sphi 0, %s49
    %s66 = sphi 0, %s50
    %s70 = sphi 0, %s70
    %s72 = sphi 0, %s70
    %s73 = sphi 0, %s72
    %s87 = sphi 0, %s73
    %s91 = sphi 0, %s91
    %s93 = sphi 0, %s91
    %s94 = sphi 0, %s93
    %s108 = sphi 0, %s94
    %s114 = sphi 0, %s116
    %s117 = sphi 0, %s114
    %s118 = sphi 0, %s117
    %s134 = sphi 0, %s118
  $region4: #{graph_comb_forward.1} parent=0 // loop_header_branch
    %13 = sbr.rel (%p11) target = $region8
  $region5: #{graph_comb_forward.1} parent=0 // loop_body
    %s15 = ssub.s32 %s10, 1
    %s16 = ssub.s32 %s10, 2
    %s17 = sadd.s32 %s10, 1
    %s18 = ssub.s32 %s10, %s17
    %p19 = scmp.eq.s32.totalorder %s18, 0
    %s21 = sadd.s32 %s20, 1
    %s22 = scalar_select %p19, %s20, %s21
    %p25 = pneg %p19
    %p26 = scmp.eq.s32.totalorder %s10, 1
    %p27 = por %p25, %p26
    %p28 = scmp.ne.s32.totalorder %s20, %s23
    %p29 = scmp.eq.s32.totalorder %s10, 0
    %p30 = por %p28, %p29
    %p31 = scmp.ne.s32.totalorder %s20, %s23
    %p32 = scmp.eq.s32.totalorder %s15, 1
    %p33 = por %p31, %p32
    %p34 = scmp.ne.s32.totalorder %s23, %s24
    %p35 = scmp.eq.s32.totalorder %s15, 0
    %p36 = por %p34, %p35
    %p37 = scmp.ne.s32.totalorder %s23, %s24
    %p38 = scmp.eq.s32.totalorder %s16, 1
    %p39 = por %p37, %p38
    %p41 = scmp.ne.s32.totalorder %s24, %s40
    %p42 = scmp.eq.s32.totalorder %s16, 0
    %p43 = por %p41, %p42
    %s44 = ssub.s32 %s10, %s17
    %p45 = scmp.eq.s32.totalorder %s44, 0
    %s47 = sadd.s32 %s46, 1
    %s48 = scalar_select %p45, %s46, %s47
    %p51 = pneg %p45
    %p52 = scmp.eq.s32.totalorder %s10, 1
    %p53 = por %p51, %p52
    %p54 = scmp.ne.s32.totalorder %s46, %s49
    %p55 = scmp.eq.s32.totalorder %s10, 0
    %p56 = por %p54, %p55
    %p57 = scmp.ne.s32.totalorder %s46, %s49
    %p58 = scmp.eq.s32.totalorder %s15, 1
    %p59 = por %p57, %p58
    %p60 = scmp.ne.s32.totalorder %s49, %s50
    %p61 = scmp.eq.s32.totalorder %s15, 0
    %p62 = por %p60, %p61
    %p63 = scmp.ne.s32.totalorder %s49, %s50
    %p64 = scmp.eq.s32.totalorder %s16, 1
    %p65 = por %p63, %p64
    %p67 = scmp.ne.s32.totalorder %s50, %s66
    %p68 = scmp.eq.s32.totalorder %s16, 0
    %p69 = por %p67, %p68
    %s71 = sadd.s32 %s70, 1
    %p74 = scmp.eq.s32.totalorder %s10, 1
    %p75 = scmp.ne.s32.totalorder %s70, %s72
    %p76 = scmp.eq.s32.totalorder %s10, 0
    %p77 = por %p75, %p76
    %p78 = scmp.ne.s32.totalorder %s70, %s72
    %p79 = scmp.eq.s32.totalorder %s15, 1
    %p80 = por %p78, %p79
    %p81 = scmp.ne.s32.totalorder %s72, %s73
    %p82 = scmp.eq.s32.totalorder %s15, 0
    %p83 = por %p81, %p82
    %p84 = scmp.ne.s32.totalorder %s72, %s73
    %p85 = scmp.eq.s32.totalorder %s16, 1
    %p86 = por %p84, %p85
    %p88 = scmp.ne.s32.totalorder %s73, %s87
    %p89 = scmp.eq.s32.totalorder %s16, 0
    %p90 = por %p88, %p89
    %s92 = sadd.s32 %s91, 1
    %p95 = scmp.eq.s32.totalorder %s10, 1
    %p96 = scmp.ne.s32.totalorder %s91, %s93
    %p97 = scmp.eq.s32.totalorder %s10, 0
    %p98 = por %p96, %p97
    %p99 = scmp.ne.s32.totalorder %s91, %s93
    %p100 = scmp.eq.s32.totalorder %s15, 1
    %p101 = por %p99, %p100
    %p102 = scmp.ne.s32.totalorder %s93, %s94
    %p103 = scmp.eq.s32.totalorder %s15, 0
    %p104 = por %p102, %p103
    %p105 = scmp.ne.s32.totalorder %s93, %s94
    %p106 = scmp.eq.s32.totalorder %s16, 1
    %p107 = por %p105, %p106
    %p109 = scmp.ne.s32.totalorder %s94, %s108
    %p110 = scmp.eq.s32.totalorder %s16, 0
    %p111 = por %p109, %p110
    %s112 = ssub.s32 %s10, %s17
    %p113 = scmp.eq.s32.totalorder %s112, 0
    %s115 = sadd.s32 %s114, 1
    %s116 = scalar_select %p113, %s114, %s115
    %p119 = pneg %p113
    %p120 = scmp.eq.s32.totalorder %s10, 1
    %p121 = por %p119, %p120
    %p122 = scmp.ne.s32.totalorder %s114, %s117
    %p123 = scmp.eq.s32.totalorder %s10, 0
    %p124 = por %p122, %p123
    %p125 = scmp.ne.s32.totalorder %s114, %s117
    %p126 = scmp.eq.s32.totalorder %s15, 1
    %p127 = por %p125, %p126
    %p128 = scmp.ne.s32.totalorder %s117, %s118
    %p129 = scmp.eq.s32.totalorder %s15, 0
    %p130 = por %p128, %p129
    %p131 = scmp.ne.s32.totalorder %s117, %s118
    %p132 = scmp.eq.s32.totalorder %s16, 1
    %p133 = por %p131, %p132
    %p135 = scmp.ne.s32.totalorder %s118, %s134
    %p136 = scmp.eq.s32.totalorder %s16, 0
    %p137 = por %p135, %p136
    %p138 = scmp.le.s32.totalorder 1, %s10
    %p139 = scmp.lt.s32.totalorder %s10, 3
    %p140 = pnand %p138, %p139
    %p141 = pneg %p140
    // Predicated region
    $region9: #{graph_comb_forward.1} parent=5 // pred_check
      _
    $region10: #{graph_comb_forward.1} parent=5 // pred_check_branch
      %143 = sbr.rel (%p140) target = $region12
    $region11: #{graph_comb_forward.1} parent=5 // pred_region
      %s144 = ssub.s32 %s10, 1
      // Predicated region
      $region13: #{graph_comb_forward.1} parent=11 // pred_check
        %p145 = pneg %p83
      $region14: #{graph_comb_forward.1} parent=11 // pred_check_branch
        %147 = sbr.rel (%p145) target = $region16
      $region15: #{graph_comb_forward.1} parent=11 // pred_region
        _
      $region16: #{graph_comb_forward.1} parent=11 // pred_fallthru
        _
      // Predicated region
      $region17: #{graph_comb_forward.1} parent=11 // pred_check
        %p148 = pneg %p104
      $region18: #{graph_comb_forward.1} parent=11 // pred_check_branch
        %150 = sbr.rel (%p148) target = $region20
      $region19: #{graph_comb_forward.1} parent=11 // pred_region
        _
      $region20: #{graph_comb_forward.1} parent=11 // pred_fallthru
        _
    $region12: #{graph_comb_forward.1} parent=5 // pred_fallthru
      _
    %p151 = scmp.lt.s32.totalorder %s10, 2
    // Predicated region
    $region21: #{graph_comb_forward.1} parent=5 // pred_check
      %p152 = pneg %p151
    $region22: #{graph_comb_forward.1} parent=5 // pred_check_branch
      %154 = sbr.rel (%p152) target = $region24
    $region23: #{graph_comb_forward.1} parent=5 // pred_region
      // Predicated region
      $region25: #{graph_comb_forward.1} parent=23 // pred_check
        %p155 = pneg %p30
      $region26: #{graph_comb_forward.1} parent=23 // pred_check_branch
        %157 = sbr.rel (%p155) target = $region28
      $region27: #{graph_comb_forward.1} parent=23 // pred_region
        %s158 = smul.u32 4, %s10
        %p159 = scmp.lt.s32.totalorder %s158, 7
        %s160 = scalar_select %p159, %s158, 7
        %s161 = smul.addr %s160, 8
        %s162 = scalar_lea.vmem %s0, %s161
        %s163 = smul.u32 4, %s10
      $region28: #{graph_comb_forward.1} parent=23 // pred_fallthru
        _
      // Predicated region
      $region29: #{graph_comb_forward.1} parent=23 // pred_check
        %p164 = pneg %p56
      $region30: #{graph_comb_forward.1} parent=23 // pred_check_branch
        %166 = sbr.rel (%p164) target = $region32
      $region31: #{graph_comb_forward.1} parent=23 // pred_region
        %s167 = smul.u32 4, %s10
        %p168 = scmp.lt.s32.totalorder %s167, 7
        %s169 = scalar_select %p168, %s167, 7
        %s170 = smul.addr %s169, 8
        %s171 = scalar_lea.vmem %s1, %s170
        %s172 = smul.u32 4, %s10
      $region32: #{graph_comb_forward.1} parent=23 // pred_fallthru
        _
    $region24: #{graph_comb_forward.1} parent=5 // pred_fallthru
      _
    %p173 = scmp.le.s32.totalorder 1, %s10
    %p174 = scmp.lt.s32.totalorder %s10, 3
    %p175 = pnand %p173, %p174
    %p176 = pneg %p175
    // Predicated region
    $region33: #{graph_comb_forward.1} parent=5 // pred_check
      _
    $region34: #{graph_comb_forward.1} parent=5 // pred_check_branch
      %178 = sbr.rel (%p175) target = $region36
    $region35: #{graph_comb_forward.1} parent=5 // pred_region
      %s179 = ssub.s32 %s10, 1
      %s180 = smul.u32 4, %s15
      %p181 = scmp.lt.s32.totalorder %s180, 7
      %s182 = scalar_select %p181, %s180, 7
      %s183 = smul.addr %s182, 8
      %s184 = scalar_lea.vmem %s0, %s183
      %p185 = pneg %p36
      %p186 = pneg %p33
      %s187 = smul.u32 4, %s15
      %p188 = scmp.lt.s32.totalorder %s187, 7
      %s189 = scalar_select %p188, %s187, 7
      %s190 = smul.addr %s189, 8
      %s191 = scalar_lea.vmem %s1, %s190
      %p192 = pneg %p62
      %p193 = pneg %p59
      %p194 = pneg %p83
      %p195 = pneg %p80
      %p196 = pneg %p104
      %p197 = pneg %p101
      %p198 = pneg %p130
      %p199 = pneg %p127
      %p200 = scmp.lt.s32.totalorder %s15, 1
      %s201 = scalar_select %p200, %s15, 1
      %s202 = smul.addr %s201, 8
      %s203 = scalar_lea.vmem %s4, %s202
      %s204 = smul.u32 4, %s15
      %p205 = scmp.lt.s32.totalorder %s204, 7
      %s206 = scalar_select %p205, %s204, 7
      %s207 = smul.addr %s206, 8
      %s208 = scalar_lea.vmem %s0, %s207
      %s209 = smul.u32 4, %s15
      %s210 = smul.u32 4, %s15
      %p211 = scmp.lt.s32.totalorder %s210, 7
      %s212 = scalar_select %p211, %s210, 7
      %s213 = smul.addr %s212, 8
      %s214 = scalar_lea.vmem %s1, %s213
      %s215 = smul.u32 4, %s15
      %p216 = scmp.lt.s32.totalorder %s15, 1
      %s217 = scalar_select %p216, %s15, 1
      %s218 = smul.addr %s217, 8
      %s219 = scalar_lea.vmem %s4, %s218
      %v220 = vld [vmem:[%s2] sm:$0xff]
      %v221 = vld [vmem:[%s2 + $0x8] sm:$0xff]
      %v222 = vld [vmem:[%s2 + $0x10] sm:$0xff]
      %v223 = vld [vmem:[%s2 + $0x18] sm:$0xff]
      %v224 = vld [vmem:[%s2 + $0x20] sm:$0xff]
      %v225 = vld [vmem:[%s2 + $0x28] sm:$0xff]
      %v226 = vld [vmem:[%s2 + $0x30] sm:$0xff]
      %v227 = vld [vmem:[%s2 + $0x38] sm:$0xff]
      %v228 = vld [vmem:[%s2 + $0x40] sm:$0xff]
      %v229 = vld [vmem:[%s2 + $0x48] sm:$0xff]
      %v230 = vld [vmem:[%s2 + $0x50] sm:$0xff]
      %v231 = vld [vmem:[%s2 + $0x58] sm:$0xff]
      %v232 = vld [vmem:[%s2 + $0x60] sm:$0xff]
      %v233 = vld [vmem:[%s2 + $0x68] sm:$0xff]
      %v234 = vld [vmem:[%s2 + $0x70] sm:$0xff]
      %v235 = vld [vmem:[%s2 + $0x78] sm:$0xff]
      %v236 = vld [vmem:[%s3] sm:$0x1]
      %v237 = vld [vmem:[%s208] sm:$0xff]
      %vm238 = vcmask 261120
      %v240 = vsel %vm238, %v237, 0
      %242 = vmatprep.subr.mxu0 0.0
      %243 = vmatpush1.msra.mxu0 %v220
      %244 = vmatprep.subr.mxu0 0.0
      %245 = vmatpush1.msra.mxu0 %v221
      %246 = vmatprep.subr.mxu0 0.0
      %247 = vmatpush1.msra.mxu0 %v222
      %248 = vmatprep.subr.mxu0 0.0
      %249 = vmatpush1.msra.mxu0 %v223
      %250 = vmatprep.subr.mxu0 0.0
      %251 = vmatpush1.msra.mxu0 0.0
      %252 = vmatprep.subr.mxu0 0.0
      %253 = vmatpush1.msra.mxu0 0.0
      %254 = vmatprep.subr.mxu0 0.0
      %255 = vmatpush1.msra.mxu0 0.0
      %256 = vmatprep.subr.mxu0 0.0
      %257 = vmatpush1.msra.mxu0 0.0
      %258 = vmatprep.subr.mxu0 0.0
      %259 = vmatpush1.msra.mxu0 0.0
      %260 = vmatprep.subr.mxu0 0.0
      %261 = vmatpush1.msra.mxu0 0.0
      %262 = vmatprep.subr.mxu0 0.0
      %263 = vmatpush1.msra.mxu0 0.0
      %264 = vmatprep.subr.mxu0 0.0
      %265 = vmatpush1.msra.mxu0 0.0
      %266 = vmatprep.subr.mxu0 0.0
      %267 = vmatpush1.msra.mxu0 0.0
      %268 = vmatprep.subr.mxu0 0.0
      %269 = vmatpush1.msra.mxu0 0.0
      %270 = vmatprep.subr.mxu0 0.0
      %271 = vmatpush1.msra.mxu0 0.0
      %272 = vmatprep.subr.mxu0 0.0
      %273 = vmatpush1.msra.mxu0 0.0
      %274 = vmatprep.subr.mxu0 0.0
      %275 = vmatpush1.msra.mxu0 0.0
      %276 = vmatprep.subr.mxu0 0.0
      %277 = vmatpush1.msra.mxu0 0.0
      %278 = vmatprep.subr.mxu0 0.0
      %279 = vmatpush1.msra.mxu0 0.0
      %280 = vmatprep.subr.mxu0 0.0
      %281 = vmatpush1.msra.mxu0 0.0
      %282 = vmatprep.subr.mxu0 0.0
      %283 = vmatpush1.msra.mxu0 0.0
      %284 = vmatprep.subr.mxu0 0.0
      %285 = vmatpush1.msra.mxu0 0.0
      %286 = vmatprep.subr.mxu0 0.0
      %287 = vmatpush1.msra.mxu0 0.0
      %288 = vmatprep.subr.mxu0 0.0
      %289 = vmatpush1.msra.mxu0 0.0
      %290 = vmatprep.subr.mxu0 0.0
      %291 = vmatpush1.msra.mxu0 0.0
      %292 = vmatprep.subr.mxu0 0.0
      %293 = vmatpush1.msra.mxu0 0.0
      %294 = vmatprep.subr.mxu0 0.0
      %295 = vmatpush1.msra.mxu0 0.0
      %296 = vmatprep.subr.mxu0 0.0
      %297 = vmatpush1.msra.mxu0 0.0
      %298 = vmatprep.subr.mxu0 0.0
      %299 = vmatpush1.msra.mxu0 0.0
      %300 = vmatprep.subr.mxu0 0.0
      %301 = vmatpush1.msra.mxu0 0.0
      %302 = vmatprep.subr.mxu0 0.0
      %303 = vmatpush1.msra.mxu0 0.0
      %304 = vmatprep.subr.mxu0 0.0
      %305 = vmatpush1.msra.mxu0 0.0
      %306 = vmatprep.mubr.f32.mxu0 0.0
      %307 = vmatmul.mubr.f32.gmra.mrb[0].mxu0 %v240
      %v308 = vpop.f32.mrb[0].mxu0
      %v309 = vadd.f32 0.0, %v308
      %v310 = vpop.f32.mrb[0].mxu0
      %311 = vdwg.mxu0
      %v312 = vtanh.pop %v309
      %v313 = vld [vmem:[%s214] sm:$0xff]
      %v315 = vsel %vm238, %v313, 0
      %317 = vmatprep.subr.mxu0 0.0
      %318 = vmatpush1.msra.mxu0 %v224
      %319 = vmatprep.subr.mxu0 0.0
      %320 = vmatpush1.msra.mxu0 %v225
      %321 = vmatprep.subr.mxu0 0.0
      %322 = vmatpush1.msra.mxu0 %v226
      %323 = vmatprep.subr.mxu0 0.0
      %324 = vmatpush1.msra.mxu0 %v227
      %325 = vmatprep.subr.mxu0 0.0
      %326 = vmatpush1.msra.mxu0 0.0
      %327 = vmatprep.subr.mxu0 0.0
      %328 = vmatpush1.msra.mxu0 0.0
      %329 = vmatprep.subr.mxu0 0.0
      %330 = vmatpush1.msra.mxu0 0.0
      %331 = vmatprep.subr.mxu0 0.0
      %332 = vmatpush1.msra.mxu0 0.0
      %333 = vmatprep.subr.mxu0 0.0
      %334 = vmatpush1.msra.mxu0 0.0
      %335 = vmatprep.subr.mxu0 0.0
      %336 = vmatpush1.msra.mxu0 0.0
      %337 = vmatprep.subr.mxu0 0.0
      %338 = vmatpush1.msra.mxu0 0.0
      %339 = vmatprep.subr.mxu0 0.0
      %340 = vmatpush1.msra.mxu0 0.0
      %341 = vmatprep.subr.mxu0 0.0
      %342 = vmatpush1.msra.mxu0 0.0
      %343 = vmatprep.subr.mxu0 0.0
      %344 = vmatpush1.msra.mxu0 0.0
      %345 = vmatprep.subr.mxu0 0.0
      %346 = vmatpush1.msra.mxu0 0.0
      %347 = vmatprep.subr.mxu0 0.0
      %348 = vmatpush1.msra.mxu0 0.0
      %349 = vmatprep.subr.mxu0 0.0
      %350 = vmatpush1.msra.mxu0 0.0
      %351 = vmatprep.subr.mxu0 0.0
      %352 = vmatpush1.msra.mxu0 0.0
      %353 = vmatprep.subr.mxu0 0.0
      %354 = vmatpush1.msra.mxu0 0.0
      %355 = vmatprep.subr.mxu0 0.0
      %356 = vmatpush1.msra.mxu0 0.0
      %357 = vmatprep.subr.mxu0 0.0
      %358 = vmatpush1.msra.mxu0 0.0
      %359 = vmatprep.subr.mxu0 0.0
      %360 = vmatpush1.msra.mxu0 0.0
      %361 = vmatprep.subr.mxu0 0.0
      %362 = vmatpush1.msra.mxu0 0.0
      %363 = vmatprep.subr.mxu0 0.0
      %364 = vmatpush1.msra.mxu0 0.0
      %365 = vmatprep.subr.mxu0 0.0
      %366 = vmatpush1.msra.mxu0 0.0
      %367 = vmatprep.subr.mxu0 0.0
      %368 = vmatpush1.msra.mxu0 0.0
      %369 = vmatprep.subr.mxu0 0.0
      %370 = vmatpush1.msra.mxu0 0.0
      %371 = vmatprep.subr.mxu0 0.0
      %372 = vmatpush1.msra.mxu0 0.0
      %373 = vmatprep.subr.mxu0 0.0
      %374 = vmatpush1.msra.mxu0 0.0
      %375 = vmatprep.subr.mxu0 0.0
      %376 = vmatpush1.msra.mxu0 0.0
      %377 = vmatprep.subr.mxu0 0.0
      %378 = vmatpush1.msra.mxu0 0.0
      %379 = vmatprep.subr.mxu0 0.0
      %380 = vmatpush1.msra.mxu0 0.0
      %381 = vmatprep.mubr.f32.mxu0 0.0
      %382 = vmatmul.mubr.f32.gmra.mrb[0].mxu0 %v315
      %v383 = vpop.f32.mrb[0].mxu0
      %v384 = vadd.f32 0.0, %v383
      %v385 = vpop.f32.mrb[0].mxu0
      %386 = vdwg.mxu0
      %v387 = vtanh.pop %v384
      %v389 = vsel %vm238, %v387, 0
      %391 = vmatprep.subr.mxu0 0.0
      %392 = vmatpush1.msra.mxu0 %v232
      %393 = vmatprep.subr.mxu0 0.0
      %394 = vmatpush1.msra.mxu0 %v233
      %395 = vmatprep.subr.mxu0 0.0
      %396 = vmatpush1.msra.mxu0 %v234
      %397 = vmatprep.subr.mxu0 0.0
      %398 = vmatpush1.msra.mxu0 %v235
      %399 = vmatprep.subr.mxu0 0.0
      %400 = vmatpush1.msra.mxu0 0.0
      %401 = vmatprep.subr.mxu0 0.0
      %402 = vmatpush1.msra.mxu0 0.0
      %403 = vmatprep.subr.mxu0 0.0
      %404 = vmatpush1.msra.mxu0 0.0
      %405 = vmatprep.subr.mxu0 0.0
      %406 = vmatpush1.msra.mxu0 0.0
      %407 = vmatprep.subr.mxu0 0.0
      %408 = vmatpush1.msra.mxu0 0.0
      %409 = vmatprep.subr.mxu0 0.0
      %410 = vmatpush1.msra.mxu0 0.0
      %411 = vmatprep.subr.mxu0 0.0
      %412 = vmatpush1.msra.mxu0 0.0
      %413 = vmatprep.subr.mxu0 0.0
      %414 = vmatpush1.msra.mxu0 0.0
      %415 = vmatprep.subr.mxu0 0.0
      %416 = vmatpush1.msra.mxu0 0.0
      %417 = vmatprep.subr.mxu0 0.0
      %418 = vmatpush1.msra.mxu0 0.0
      %419 = vmatprep.subr.mxu0 0.0
      %420 = vmatpush1.msra.mxu0 0.0
      %421 = vmatprep.subr.mxu0 0.0
      %422 = vmatpush1.msra.mxu0 0.0
      %423 = vmatprep.subr.mxu0 0.0
      %424 = vmatpush1.msra.mxu0 0.0
      %425 = vmatprep.subr.mxu0 0.0
      %426 = vmatpush1.msra.mxu0 0.0
      %427 = vmatprep.subr.mxu0 0.0
      %428 = vmatpush1.msra.mxu0 0.0
      %429 = vmatprep.subr.mxu0 0.0
      %430 = vmatpush1.msra.mxu0 0.0
      %431 = vmatprep.subr.mxu0 0.0
      %432 = vmatpush1.msra.mxu0 0.0
      %433 = vmatprep.subr.mxu0 0.0
      %434 = vmatpush1.msra.mxu0 0.0
      %435 = vmatprep.subr.mxu0 0.0
      %436 = vmatpush1.msra.mxu0 0.0
      %437 = vmatprep.subr.mxu0 0.0
      %438 = vmatpush1.msra.mxu0 0.0
      %439 = vmatprep.subr.mxu0 0.0
      %440 = vmatpush1.msra.mxu0 0.0
      %441 = vmatprep.subr.mxu0 0.0
      %442 = vmatpush1.msra.mxu0 0.0
      %443 = vmatprep.subr.mxu0 0.0
      %444 = vmatpush1.msra.mxu0 0.0
      %445 = vmatprep.subr.mxu0 0.0
      %446 = vmatpush1.msra.mxu0 0.0
      %447 = vmatprep.subr.mxu0 0.0
      %448 = vmatpush1.msra.mxu0 0.0
      %449 = vmatprep.subr.mxu0 0.0
      %450 = vmatpush1.msra.mxu0 0.0
      %451 = vmatprep.subr.mxu0 0.0
      %452 = vmatpush1.msra.mxu0 0.0
      %453 = vmatprep.subr.mxu0 0.0
      %454 = vmatpush1.msra.mxu0 0.0
      %455 = vmatprep.mubr.f32.mxu0 0.0
      %456 = vmatmul.mubr.f32.gmra.mrb[0].mxu0 %v389
      %v457 = vpop.f32.mrb[0].mxu0
      %v458 = vadd.f32 0.0, %v457
      %v459 = vpop.f32.mrb[0].mxu0
      %460 = vdwg.mxu0
      %v462 = vsel %vm238, %v312, 0
      %464 = vmatprep.subr.mxu0 0.0
      %465 = vmatpush1.msra.mxu0 %v228
      %466 = vmatprep.subr.mxu0 0.0
      %467 = vmatpush1.msra.mxu0 %v229
      %468 = vmatprep.subr.mxu0 0.0
      %469 = vmatpush1.msra.mxu0 %v230
      %470 = vmatprep.subr.mxu0 0.0
      %471 = vmatpush1.msra.mxu0 %v231
      %472 = vmatprep.subr.mxu0 0.0
      %473 = vmatpush1.msra.mxu0 0.0
      %474 = vmatprep.subr.mxu0 0.0
      %475 = vmatpush1.msra.mxu0 0.0
      %476 = vmatprep.subr.mxu0 0.0
      %477 = vmatpush1.msra.mxu0 0.0
      %478 = vmatprep.subr.mxu0 0.0
      %479 = vmatpush1.msra.mxu0 0.0
      %480 = vmatprep.subr.mxu0 0.0
      %481 = vmatpush1.msra.mxu0 0.0
      %482 = vmatprep.subr.mxu0 0.0
      %483 = vmatpush1.msra.mxu0 0.0
      %484 = vmatprep.subr.mxu0 0.0
      %485 = vmatpush1.msra.mxu0 0.0
      %486 = vmatprep.subr.mxu0 0.0
      %487 = vmatpush1.msra.mxu0 0.0
      %488 = vmatprep.subr.mxu0 0.0
      %489 = vmatpush1.msra.mxu0 0.0
      %490 = vmatprep.subr.mxu0 0.0
      %491 = vmatpush1.msra.mxu0 0.0
      %492 = vmatprep.subr.mxu0 0.0
      %493 = vmatpush1.msra.mxu0 0.0
      %494 = vmatprep.subr.mxu0 0.0
      %495 = vmatpush1.msra.mxu0 0.0
      %496 = vmatprep.subr.mxu0 0.0
      %497 = vmatpush1.msra.mxu0 0.0
      %498 = vmatprep.subr.mxu0 0.0
      %499 = vmatpush1.msra.mxu0 0.0
      %500 = vmatprep.subr.mxu0 0.0
      %501 = vmatpush1.msra.mxu0 0.0
      %502 = vmatprep.subr.mxu0 0.0
      %503 = vmatpush1.msra.mxu0 0.0
      %504 = vmatprep.subr.mxu0 0.0
      %505 = vmatpush1.msra.mxu0 0.0
      %506 = vmatprep.subr.mxu0 0.0
      %507 = vmatpush1.msra.mxu0 0.0
      %508 = vmatprep.subr.mxu0 0.0
      %509 = vmatpush1.msra.mxu0 0.0
      %510 = vmatprep.subr.mxu0 0.0
      %511 = vmatpush1.msra.mxu0 0.0
      %512 = vmatprep.subr.mxu0 0.0
      %513 = vmatpush1.msra.mxu0 0.0
      %514 = vmatprep.subr.mxu0 0.0
      %515 = vmatpush1.msra.mxu0 0.0
      %516 = vmatprep.subr.mxu0 0.0
      %517 = vmatpush1.msra.mxu0 0.0
      %518 = vmatprep.subr.mxu0 0.0
      %519 = vmatpush1.msra.mxu0 0.0
      %520 = vmatprep.subr.mxu0 0.0
      %521 = vmatpush1.msra.mxu0 0.0
      %522 = vmatprep.subr.mxu0 0.0
      %523 = vmatpush1.msra.mxu0 0.0
      %524 = vmatprep.subr.mxu0 0.0
      %525 = vmatpush1.msra.mxu0 0.0
      %526 = vmatprep.subr.mxu0 0.0
      %527 = vmatpush1.msra.mxu0 0.0
      %528 = vmatprep.mubr.f32.mxu0 0.0
      %529 = vmatmul.mubr.f32.gmra.mrb[0].mxu0 %v462
      %v530 = vpop.f32.mrb[0].mxu0
      %v531 = vadd.f32 %v458, %v530
      %v532 = vpop.f32.mrb[0].mxu0
      %533 = vdwg.mxu0
      %v535 = vlaneseq
      %v536 = vshrl.u32 %v535, 7
      %v537 = vsub.s32 0, %v536
      %v538 = vrot.slane %v236, %v537
      %v540 = vadd.f32 %v531, %v538
      %v541 = vmul.f32 %v540, %v540
      %v542 = vsel %vm238, %v541, 0.0
      %543 = vadd.xlane.f32.xlu0 %v542
      %v544 = vpop.xlane.xlu0 %543
      %v545 = vrot.slane %v544, 4
      %v546 = vadd.f32 %v544, %v545
      %v547 = vrot.slane %v546, 2
      %v548 = vadd.f32 %v546, %v547
      %v549 = vrot.slane %v548, 1
      %v550 = vadd.f32 %v548, %v549
      %s551 = vtos %v550
      %v552 = vstv %s551
      %v553 = vrsqrt.pop %v552
      %s554 = vtos %v553
      %v555 = vstv %s554
      %v556 = vmul.f32 %v540, %v555
      %s557 = scalar_lea.vmem %s208, 8
      %v558 = vld [vmem:[%s557] sm:$0xff]
      %v560 = vsel %vm238, %v558, 0
      %562 = vmatprep.subr.mxu0 0.0
      %563 = vmatpush1.msra.mxu0 %v220
      %564 = vmatprep.subr.mxu0 0.0
      %565 = vmatpush1.msra.mxu0 %v221
      %566 = vmatprep.subr.mxu0 0.0
      %567 = vmatpush1.msra.mxu0 %v222
      %568 = vmatprep.subr.mxu0 0.0
      %569 = vmatpush1.msra.mxu0 %v223
      %570 = vmatprep.subr.mxu0 0.0
      %571 = vmatpush1.msra.mxu0 0.0
      %572 = vmatprep.subr.mxu0 0.0
      %573 = vmatpush1.msra.mxu0 0.0
      %574 = vmatprep.subr.mxu0 0.0
      %575 = vmatpush1.msra.mxu0 0.0
      %576 = vmatprep.subr.mxu0 0.0
      %577 = vmatpush1.msra.mxu0 0.0
      %578 = vmatprep.subr.mxu0 0.0
      %579 = vmatpush1.msra.mxu0 0.0
      %580 = vmatprep.subr.mxu0 0.0
      %581 = vmatpush1.msra.mxu0 0.0
      %582 = vmatprep.subr.mxu0 0.0
      %583 = vmatpush1.msra.mxu0 0.0
      %584 = vmatprep.subr.mxu0 0.0
      %585 = vmatpush1.msra.mxu0 0.0
      %586 = vmatprep.subr.mxu0 0.0
      %587 = vmatpush1.msra.mxu0 0.0
      %588 = vmatprep.subr.mxu0 0.0
      %589 = vmatpush1.msra.mxu0 0.0
      %590 = vmatprep.subr.mxu0 0.0
      %591 = vmatpush1.msra.mxu0 0.0
      %592 = vmatprep.subr.mxu0 0.0
      %593 = vmatpush1.msra.mxu0 0.0
      %594 = vmatprep.subr.mxu0 0.0
      %595 = vmatpush1.msra.mxu0 0.0
      %596 = vmatprep.subr.mxu0 0.0
      %597 = vmatpush1.msra.mxu0 0.0
      %598 = vmatprep.subr.mxu0 0.0
      %599 = vmatpush1.msra.mxu0 0.0
      %600 = vmatprep.subr.mxu0 0.0
      %601 = vmatpush1.msra.mxu0 0.0
      %602 = vmatprep.subr.mxu0 0.0
      %603 = vmatpush1.msra.mxu0 0.0
      %604 = vmatprep.subr.mxu0 0.0
      %605 = vmatpush1.msra.mxu0 0.0
      %606 = vmatprep.subr.mxu0 0.0
      %607 = vmatpush1.msra.mxu0 0.0
      %608 = vmatprep.subr.mxu0 0.0
      %609 = vmatpush1.msra.mxu0 0.0
      %610 = vmatprep.subr.mxu0 0.0
      %611 = vmatpush1.msra.mxu0 0.0
      %612 = vmatprep.subr.mxu0 0.0
      %613 = vmatpush1.msra.mxu0 0.0
      %614 = vmatprep.subr.mxu0 0.0
      %615 = vmatpush1.msra.mxu0 0.0
      %616 = vmatprep.subr.mxu0 0.0
      %617 = vmatpush1.msra.mxu0 0.0
      %618 = vmatprep.subr.mxu0 0.0
      %619 = vmatpush1.msra.mxu0 0.0
      %620 = vmatprep.subr.mxu0 0.0
      %621 = vmatpush1.msra.mxu0 0.0
      %622 = vmatprep.subr.mxu0 0.0
      %623 = vmatpush1.msra.mxu0 0.0
      %624 = vmatprep.subr.mxu0 0.0
      %625 = vmatpush1.msra.mxu0 0.0
      %626 = vmatprep.mubr.f32.mxu0 0.0
      %627 = vmatmul.mubr.f32.gmra.mrb[0].mxu0 %v560
      %v628 = vpop.f32.mrb[0].mxu0
      %v629 = vadd.f32 0.0, %v628
      %v630 = vpop.f32.mrb[0].mxu0
      %631 = vdwg.mxu0
      %v632 = vtanh.pop %v629
      %s633 = scalar_lea.vmem %s214, 8
      %v634 = vld [vmem:[%s633] sm:$0xff]
      %v636 = vsel %vm238, %v634, 0
      %638 = vmatprep.subr.mxu0 0.0
      %639 = vmatpush1.msra.mxu0 %v224
      %640 = vmatprep.subr.mxu0 0.0
      %641 = vmatpush1.msra.mxu0 %v225
      %642 = vmatprep.subr.mxu0 0.0
      %643 = vmatpush1.msra.mxu0 %v226
      %644 = vmatprep.subr.mxu0 0.0
      %645 = vmatpush1.msra.mxu0 %v227
      %646 = vmatprep.subr.mxu0 0.0
      %647 = vmatpush1.msra.mxu0 0.0
      %648 = vmatprep.subr.mxu0 0.0
      %649 = vmatpush1.msra.mxu0 0.0
      %650 = vmatprep.subr.mxu0 0.0
      %651 = vmatpush1.msra.mxu0 0.0
      %652 = vmatprep.subr.mxu0 0.0
      %653 = vmatpush1.msra.mxu0 0.0
      %654 = vmatprep.subr.mxu0 0.0
      %655 = vmatpush1.msra.mxu0 0.0
      %656 = vmatprep.subr.mxu0 0.0
      %657 = vmatpush1.msra.mxu0 0.0
      %658 = vmatprep.subr.mxu0 0.0
      %659 = vmatpush1.msra.mxu0 0.0
      %660 = vmatprep.subr.mxu0 0.0
      %661 = vmatpush1.msra.mxu0 0.0
      %662 = vmatprep.subr.mxu0 0.0
      %663 = vmatpush1.msra.mxu0 0.0
      %664 = vmatprep.subr.mxu0 0.0
      %665 = vmatpush1.msra.mxu0 0.0
      %666 = vmatprep.subr.mxu0 0.0
      %667 = vmatpush1.msra.mxu0 0.0
      %668 = vmatprep.subr.mxu0 0.0
      %669 = vmatpush1.msra.mxu0 0.0
      %670 = vmatprep.subr.mxu0 0.0
      %671 = vmatpush1.msra.mxu0 0.0
      %672 = vmatprep.subr.mxu0 0.0
      %673 = vmatpush1.msra.mxu0 0.0
      %674 = vmatprep.subr.mxu0 0.0
      %675 = vmatpush1.msra.mxu0 0.0
      %676 = vmatprep.subr.mxu0 0.0
      %677 = vmatpush1.msra.mxu0 0.0
      %678 = vmatprep.subr.mxu0 0.0
      %679 = vmatpush1.msra.mxu0 0.0
      %680 = vmatprep.subr.mxu0 0.0
      %681 = vmatpush1.msra.mxu0 0.0
      %682 = vmatprep.subr.mxu0 0.0
      %683 = vmatpush1.msra.mxu0 0.0
      %684 = vmatprep.subr.mxu0 0.0
      %685 = vmatpush1.msra.mxu0 0.0
      %686 = vmatprep.subr.mxu0 0.0
      %687 = vmatpush1.msra.mxu0 0.0
      %688 = vmatprep.subr.mxu0 0.0
      %689 = vmatpush1.msra.mxu0 0.0
      %690 = vmatprep.subr.mxu0 0.0
      %691 = vmatpush1.msra.mxu0 0.0
      %692 = vmatprep.subr.mxu0 0.0
      %693 = vmatpush1.msra.mxu0 0.0
      %694 = vmatprep.subr.mxu0 0.0
      %695 = vmatpush1.msra.mxu0 0.0
      %696 = vmatprep.subr.mxu0 0.0
      %697 = vmatpush1.msra.mxu0 0.0
      %698 = vmatprep.subr.mxu0 0.0
      %699 = vmatpush1.msra.mxu0 0.0
      %700 = vmatprep.subr.mxu0 0.0
      %701 = vmatpush1.msra.mxu0 0.0
      %702 = vmatprep.mubr.f32.mxu0 0.0
      %703 = vmatmul.mubr.f32.gmra.mrb[0].mxu0 %v636
      %v704 = vpop.f32.mrb[0].mxu0
      %v705 = vadd.f32 0.0, %v704
      %v706 = vpop.f32.mrb[0].mxu0
      %707 = vdwg.mxu0
      %v708 = vtanh.pop %v705
      %v710 = vsel %vm238, %v708, 0
      %712 = vmatprep.subr.mxu0 0.0
      %713 = vmatpush1.msra.mxu0 %v232
      %714 = vmatprep.subr.mxu0 0.0
      %715 = vmatpush1.msra.mxu0 %v233
      %716 = vmatprep.subr.mxu0 0.0
      %717 = vmatpush1.msra.mxu0 %v234
      %718 = vmatprep.subr.mxu0 0.0
      %719 = vmatpush1.msra.mxu0 %v235
      %720 = vmatprep.subr.mxu0 0.0
      %721 = vmatpush1.msra.mxu0 0.0
      %722 = vmatprep.subr.mxu0 0.0
      %723 = vmatpush1.msra.mxu0 0.0
      %724 = vmatprep.subr.mxu0 0.0
      %725 = vmatpush1.msra.mxu0 0.0
      %726 = vmatprep.subr.mxu0 0.0
      %727 = vmatpush1.msra.mxu0 0.0
      %728 = vmatprep.subr.mxu0 0.0
      %729 = vmatpush1.msra.mxu0 0.0
      %730 = vmatprep.subr.mxu0 0.0
      %731 = vmatpush1.msra.mxu0 0.0
      %732 = vmatprep.subr.mxu0 0.0
      %733 = vmatpush1.msra.mxu0 0.0
      %734 = vmatprep.subr.mxu0 0.0
      %735 = vmatpush1.msra.mxu0 0.0
      %736 = vmatprep.subr.mxu0 0.0
      %737 = vmatpush1.msra.mxu0 0.0
      %738 = vmatprep.subr.mxu0 0.0
      %739 = vmatpush1.msra.mxu0 0.0
      %740 = vmatprep.subr.mxu0 0.0
      %741 = vmatpush1.msra.mxu0 0.0
      %742 = vmatprep.subr.mxu0 0.0
      %743 = vmatpush1.msra.mxu0 0.0
      %744 = vmatprep.subr.mxu0 0.0
      %745 = vmatpush1.msra.mxu0 0.0
      %746 = vmatprep.subr.mxu0 0.0
      %747 = vmatpush1.msra.mxu0 0.0
      %748 = vmatprep.subr.mxu0 0.0
      %749 = vmatpush1.msra.mxu0 0.0
      %750 = vmatprep.subr.mxu0 0.0
      %751 = vmatpush1.msra.mxu0 0.0
      %752 = vmatprep.subr.mxu0 0.0
      %753 = vmatpush1.msra.mxu0 0.0
      %754 = vmatprep.subr.mxu0 0.0
      %755 = vmatpush1.msra.mxu0 0.0
      %756 = vmatprep.subr.mxu0 0.0
      %757 = vmatpush1.msra.mxu0 0.0
      %758 = vmatprep.subr.mxu0 0.0
      %759 = vmatpush1.msra.mxu0 0.0
      %760 = vmatprep.subr.mxu0 0.0
      %761 = vmatpush1.msra.mxu0 0.0
      %762 = vmatprep.subr.mxu0 0.0
      %763 = vmatpush1.msra.mxu0 0.0
      %764 = vmatprep.subr.mxu0 0.0
      %765 = vmatpush1.msra.mxu0 0.0
      %766 = vmatprep.subr.mxu0 0.0
      %767 = vmatpush1.msra.mxu0 0.0
      %768 = vmatprep.subr.mxu0 0.0
      %769 = vmatpush1.msra.mxu0 0.0
      %770 = vmatprep.subr.mxu0 0.0
      %771 = vmatpush1.msra.mxu0 0.0
      %772 = vmatprep.subr.mxu0 0.0
      %773 = vmatpush1.msra.mxu0 0.0
      %774 = vmatprep.subr.mxu0 0.0
      %775 = vmatpush1.msra.mxu0 0.0
      %776 = vmatprep.mubr.f32.mxu0 0.0
      %777 = vmatmul.mubr.f32.gmra.mrb[0].mxu0 %v710
      %v778 = vpop.f32.mrb[0].mxu0
      %v779 = vadd.f32 0.0, %v778
      %v780 = vpop.f32.mrb[0].mxu0
      %781 = vdwg.mxu0
      %v783 = vsel %vm238, %v632, 0
      %785 = vmatprep.subr.mxu0 0.0
      %786 = vmatpush1.msra.mxu0 %v228
      %787 = vmatprep.subr.mxu0 0.0
      %788 = vmatpush1.msra.mxu0 %v229
      %789 = vmatprep.subr.mxu0 0.0
      %790 = vmatpush1.msra.mxu0 %v230
      %791 = vmatprep.subr.mxu0 0.0
      %792 = vmatpush1.msra.mxu0 %v231
      %793 = vmatprep.subr.mxu0 0.0
      %794 = vmatpush1.msra.mxu0 0.0
      %795 = vmatprep.subr.mxu0 0.0
      %796 = vmatpush1.msra.mxu0 0.0
      %797 = vmatprep.subr.mxu0 0.0
      %798 = vmatpush1.msra.mxu0 0.0
      %799 = vmatprep.subr.mxu0 0.0
      %800 = vmatpush1.msra.mxu0 0.0
      %801 = vmatprep.subr.mxu0 0.0
      %802 = vmatpush1.msra.mxu0 0.0
      %803 = vmatprep.subr.mxu0 0.0
      %804 = vmatpush1.msra.mxu0 0.0
      %805 = vmatprep.subr.mxu0 0.0
      %806 = vmatpush1.msra.mxu0 0.0
      %807 = vmatprep.subr.mxu0 0.0
      %808 = vmatpush1.msra.mxu0 0.0
      %809 = vmatprep.subr.mxu0 0.0
      %810 = vmatpush1.msra.mxu0 0.0
      %811 = vmatprep.subr.mxu0 0.0
      %812 = vmatpush1.msra.mxu0 0.0
      %813 = vmatprep.subr.mxu0 0.0
      %814 = vmatpush1.msra.mxu0 0.0
      %815 = vmatprep.subr.mxu0 0.0
      %816 = vmatpush1.msra.mxu0 0.0
      %817 = vmatprep.subr.mxu0 0.0
      %818 = vmatpush1.msra.mxu0 0.0
      %819 = vmatprep.subr.mxu0 0.0
      %820 = vmatpush1.msra.mxu0 0.0
      %821 = vmatprep.subr.mxu0 0.0
      %822 = vmatpush1.msra.mxu0 0.0
      %823 = vmatprep.subr.mxu0 0.0
      %824 = vmatpush1.msra.mxu0 0.0
      %825 = vmatprep.subr.mxu0 0.0
      %826 = vmatpush1.msra.mxu0 0.0
      %827 = vmatprep.subr.mxu0 0.0
      %828 = vmatpush1.msra.mxu0 0.0
      %829 = vmatprep.subr.mxu0 0.0
      %830 = vmatpush1.msra.mxu0 0.0
      %831 = vmatprep.subr.mxu0 0.0
      %832 = vmatpush1.msra.mxu0 0.0
      %833 = vmatprep.subr.mxu0 0.0
      %834 = vmatpush1.msra.mxu0 0.0
      %835 = vmatprep.subr.mxu0 0.0
      %836 = vmatpush1.msra.mxu0 0.0
      %837 = vmatprep.subr.mxu0 0.0
      %838 = vmatpush1.msra.mxu0 0.0
      %839 = vmatprep.subr.mxu0 0.0
      %840 = vmatpush1.msra.mxu0 0.0
      %841 = vmatprep.subr.mxu0 0.0
      %842 = vmatpush1.msra.mxu0 0.0
      %843 = vmatprep.subr.mxu0 0.0
      %844 = vmatpush1.msra.mxu0 0.0
      %845 = vmatprep.subr.mxu0 0.0
      %846 = vmatpush1.msra.mxu0 0.0
      %847 = vmatprep.subr.mxu0 0.0
      %848 = vmatpush1.msra.mxu0 0.0
      %849 = vmatprep.mubr.f32.mxu0 0.0
      %850 = vmatmul.mubr.f32.gmra.mrb[0].mxu0 %v783
      %v851 = vpop.f32.mrb[0].mxu0
      %v852 = vadd.f32 %v779, %v851
      %v853 = vpop.f32.mrb[0].mxu0
      %854 = vdwg.mxu0
      %v855 = vadd.f32 %v852, %v538
      %v856 = vmul.f32 %v855, %v855
      %v857 = vsel %vm238, %v856, 0.0
      %858 = vadd.xlane.f32.xlu0 %v857
      %v859 = vpop.xlane.xlu0 %858
      %v860 = vrot.slane %v859, 4
      %v861 = vadd.f32 %v859, %v860
      %v862 = vrot.slane %v861, 2
      %v863 = vadd.f32 %v861, %v862
      %v864 = vrot.slane %v863, 1
      %v865 = vadd.f32 %v863, %v864
      %s866 = vtos %v865
      %v867 = vstv %s866
      %v868 = vrsqrt.pop %v867
      %s869 = vtos %v868
      %v870 = vstv %s869
      %v871 = vmul.f32 %v855, %v870
      %s872 = scalar_lea.vmem %s208, 16
      %v873 = vld [vmem:[%s872] sm:$0xff]
      %v875 = vsel %vm238, %v873, 0
      %877 = vmatprep.subr.mxu0 0.0
      %878 = vmatpush1.msra.mxu0 %v220
      %879 = vmatprep.subr.mxu0 0.0
      %880 = vmatpush1.msra.mxu0 %v221
      %881 = vmatprep.subr.mxu0 0.0
      %882 = vmatpush1.msra.mxu0 %v222
      %883 = vmatprep.subr.mxu0 0.0
      %884 = vmatpush1.msra.mxu0 %v223
      %885 = vmatprep.subr.mxu0 0.0
      %886 = vmatpush1.msra.mxu0 0.0
      %887 = vmatprep.subr.mxu0 0.0
      %888 = vmatpush1.msra.mxu0 0.0
      %889 = vmatprep.subr.mxu0 0.0
      %890 = vmatpush1.msra.mxu0 0.0
      %891 = vmatprep.subr.mxu0 0.0
      %892 = vmatpush1.msra.mxu0 0.0
      %893 = vmatprep.subr.mxu0 0.0
      %894 = vmatpush1.msra.mxu0 0.0
      %895 = vmatprep.subr.mxu0 0.0
      %896 = vmatpush1.msra.mxu0 0.0
      %897 = vmatprep.subr.mxu0 0.0
      %898 = vmatpush1.msra.mxu0 0.0
      %899 = vmatprep.subr.mxu0 0.0
      %900 = vmatpush1.msra.mxu0 0.0
      %901 = vmatprep.subr.mxu0 0.0
      %902 = vmatpush1.msra.mxu0 0.0
      %903 = vmatprep.subr.mxu0 0.0
      %904 = vmatpush1.msra.mxu0 0.0
      %905 = vmatprep.subr.mxu0 0.0
      %906 = vmatpush1.msra.mxu0 0.0
      %907 = vmatprep.subr.mxu0 0.0
      %908 = vmatpush1.msra.mxu0 0.0
      %909 = vmatprep.subr.mxu0 0.0
      %910 = vmatpush1.msra.mxu0 0.0
      %911 = vmatprep.subr.mxu0 0.0
      %912 = vmatpush1.msra.mxu0 0.0
      %913 = vmatprep.subr.mxu0 0.0
      %914 = vmatpush1.msra.mxu0 0.0
      %915 = vmatprep.subr.mxu0 0.0
      %916 = vmatpush1.msra.mxu0 0.0
      %917 = vmatprep.subr.mxu0 0.0
      %918 = vmatpush1.msra.mxu0 0.0
      %919 = vmatprep.subr.mxu0 0.0
      %920 = vmatpush1.msra.mxu0 0.0
      %921 = vmatprep.subr.mxu0 0.0
      %922 = vmatpush1.msra.mxu0 0.0
      %923 = vmatprep.subr.mxu0 0.0
      %924 = vmatpush1.msra.mxu0 0.0
      %925 = vmatprep.subr.mxu0 0.0
      %926 = vmatpush1.msra.mxu0 0.0
      %927 = vmatprep.subr.mxu0 0.0
      %928 = vmatpush1.msra.mxu0 0.0
      %929 = vmatprep.subr.mxu0 0.0
      %930 = vmatpush1.msra.mxu0 0.0
      %931 = vmatprep.subr.mxu0 0.0
      %932 = vmatpush1.msra.mxu0 0.0
      %933 = vmatprep.subr.mxu0 0.0
      %934 = vmatpush1.msra.mxu0 0.0
      %935 = vmatprep.subr.mxu0 0.0
      %936 = vmatpush1.msra.mxu0 0.0
      %937 = vmatprep.subr.mxu0 0.0
      %938 = vmatpush1.msra.mxu0 0.0
      %939 = vmatprep.subr.mxu0 0.0
      %940 = vmatpush1.msra.mxu0 0.0
      %941 = vmatprep.mubr.f32.mxu0 0.0
      %942 = vmatmul.mubr.f32.gmra.mrb[0].mxu0 %v875
      %v943 = vpop.f32.mrb[0].mxu0
      %v944 = vadd.f32 0.0, %v943
      %v945 = vpop.f32.mrb[0].mxu0
      %946 = vdwg.mxu0
      %v947 = vtanh.pop %v944
      %s948 = scalar_lea.vmem %s214, 16
      %v949 = vld [vmem:[%s948] sm:$0xff]
      %v951 = vsel %vm238, %v949, 0
      %953 = vmatprep.subr.mxu0 0.0
      %954 = vmatpush1.msra.mxu0 %v224
      %955 = vmatprep.subr.mxu0 0.0
      %956 = vmatpush1.msra.mxu0 %v225
      %957 = vmatprep.subr.mxu0 0.0
      %958 = vmatpush1.msra.mxu0 %v226
      %959 = vmatprep.subr.mxu0 0.0
      %960 = vmatpush1.msra.mxu0 %v227
      %961 = vmatprep.subr.mxu0 0.0
      %962 = vmatpush1.msra.mxu0 0.0
      %963 = vmatprep.subr.mxu0 0.0
      %964 = vmatpush1.msra.mxu0 0.0
      %965 = vmatprep.subr.mxu0 0.0
      %966 = vmatpush1.msra.mxu0 0.0
      %967 = vmatprep.subr.mxu0 0.0
      %968 = vmatpush1.msra.mxu0 0.0
      %969 = vmatprep.subr.mxu0 0.0
      %970 = vmatpush1.msra.mxu0 0.0
      %971 = vmatprep.subr.mxu0 0.0
      %972 = vmatpush1.msra.mxu0 0.0
      %973 = vmatprep.subr.mxu0 0.0
      %974 = vmatpush1.msra.mxu0 0.0
      %975 = vmatprep.subr.mxu0 0.0
      %976 = vmatpush1.msra.mxu0 0.0
      %977 = vmatprep.subr.mxu0 0.0
      %978 = vmatpush1.msra.mxu0 0.0
      %979 = vmatprep.subr.mxu0 0.0
      %980 = vmatpush1.msra.mxu0 0.0
      %981 = vmatprep.subr.mxu0 0.0
      %982 = vmatpush1.msra.mxu0 0.0
      %983 = vmatprep.subr.mxu0 0.0
      %984 = vmatpush1.msra.mxu0 0.0
      %985 = vmatprep.subr.mxu0 0.0
      %986 = vmatpush1.msra.mxu0 0.0
      %987 = vmatprep.subr.mxu0 0.0
      %988 = vmatpush1.msra.mxu0 0.0
      %989 = vmatprep.subr.mxu0 0.0
      %990 = vmatpush1.msra.mxu0 0.0
      %991 = vmatprep.subr.mxu0 0.0
      %992 = vmatpush1.msra.mxu0 0.0
      %993 = vmatprep.subr.mxu0 0.0
      %994 = vmatpush1.msra.mxu0 0.0
      %995 = vmatprep.subr.mxu0 0.0
      %996 = vmatpush1.msra.mxu0 0.0
      %997 = vmatprep.subr.mxu0 0.0
      %998 = vmatpush1.msra.mxu0 0.0
      %999 = vmatprep.subr.mxu0 0.0
      %1000 = vmatpush1.msra.mxu0 0.0
      %1001 = vmatprep.subr.mxu0 0.0
      %1002 = vmatpush1.msra.mxu0 0.0
      %1003 = vmatprep.subr.mxu0 0.0
      %1004 = vmatpush1.msra.mxu0 0.0
      %1005 = vmatprep.subr.mxu0 0.0
      %1006 = vmatpush1.msra.mxu0 0.0
      %1007 = vmatprep.subr.mxu0 0.0
      %1008 = vmatpush1.msra.mxu0 0.0
      %1009 = vmatprep.subr.mxu0 0.0
      %1010 = vmatpush1.msra.mxu0 0.0
      %1011 = vmatprep.subr.mxu0 0.0
      %1012 = vmatpush1.msra.mxu0 0.0
      %1013 = vmatprep.subr.mxu0 0.0
      %1014 = vmatpush1.msra.mxu0 0.0
      %1015 = vmatprep.subr.mxu0 0.0
      %1016 = vmatpush1.msra.mxu0 0.0
      %1017 = vmatprep.mubr.f32.mxu0 0.0
      %1018 = vmatmul.mubr.f32.gmra.mrb[0].mxu0 %v951
      %v1019 = vpop.f32.mrb[0].mxu0
      %v1020 = vadd.f32 0.0, %v1019
      %v1021 = vpop.f32.mrb[0].mxu0
      %1022 = vdwg.mxu0
      %v1023 = vtanh.pop %v1020
      %v1025 = vsel %vm238, %v1023, 0
      %1027 = vmatprep.subr.mxu0 0.0
      %1028 = vmatpush1.msra.mxu0 %v232
      %1029 = vmatprep.subr.mxu0 0.0
      %1030 = vmatpush1.msra.mxu0 %v233
      %1031 = vmatprep.subr.mxu0 0.0
      %1032 = vmatpush1.msra.mxu0 %v234
      %1033 = vmatprep.subr.mxu0 0.0
      %1034 = vmatpush1.msra.mxu0 %v235
      %1035 = vmatprep.subr.mxu0 0.0
      %1036 = vmatpush1.msra.mxu0 0.0
      %1037 = vmatprep.subr.mxu0 0.0
      %1038 = vmatpush1.msra.mxu0 0.0
      %1039 = vmatprep.subr.mxu0 0.0
      %1040 = vmatpush1.msra.mxu0 0.0
      %1041 = vmatprep.subr.mxu0 0.0
      %1042 = vmatpush1.msra.mxu0 0.0
      %1043 = vmatprep.subr.mxu0 0.0
      %1044 = vmatpush1.msra.mxu0 0.0
      %1045 = vmatprep.subr.mxu0 0.0
      %1046 = vmatpush1.msra.mxu0 0.0
      %1047 = vmatprep.subr.mxu0 0.0
      %1048 = vmatpush1.msra.mxu0 0.0
      %1049 = vmatprep.subr.mxu0 0.0
      %1050 = vmatpush1.msra.mxu0 0.0
      %1051 = vmatprep.subr.mxu0 0.0
      %1052 = vmatpush1.msra.mxu0 0.0
      %1053 = vmatprep.subr.mxu0 0.0
      %1054 = vmatpush1.msra.mxu0 0.0
      %1055 = vmatprep.subr.mxu0 0.0
      %1056 = vmatpush1.msra.mxu0 0.0
      %1057 = vmatprep.subr.mxu0 0.0
      %1058 = vmatpush1.msra.mxu0 0.0
      %1059 = vmatprep.subr.mxu0 0.0
      %1060 = vmatpush1.msra.mxu0 0.0
      %1061 = vmatprep.subr.mxu0 0.0
      %1062 = vmatpush1.msra.mxu0 0.0
      %1063 = vmatprep.subr.mxu0 0.0
      %1064 = vmatpush1.msra.mxu0 0.0
      %1065 = vmatprep.subr.mxu0 0.0
      %1066 = vmatpush1.msra.mxu0 0.0
      %1067 = vmatprep.subr.mxu0 0.0
      %1068 = vmatpush1.msra.mxu0 0.0
      %1069 = vmatprep.subr.mxu0 0.0
      %1070 = vmatpush1.msra.mxu0 0.0
      %1071 = vmatprep.subr.mxu0 0.0
      %1072 = vmatpush1.msra.mxu0 0.0
      %1073 = vmatprep.subr.mxu0 0.0
      %1074 = vmatpush1.msra.mxu0 0.0
      %1075 = vmatprep.subr.mxu0 0.0
      %1076 = vmatpush1.msra.mxu0 0.0
      %1077 = vmatprep.subr.mxu0 0.0
      %1078 = vmatpush1.msra.mxu0 0.0
      %1079 = vmatprep.subr.mxu0 0.0
      %1080 = vmatpush1.msra.mxu0 0.0
      %1081 = vmatprep.subr.mxu0 0.0
      %1082 = vmatpush1.msra.mxu0 0.0
      %1083 = vmatprep.subr.mxu0 0.0
      %1084 = vmatpush1.msra.mxu0 0.0
      %1085 = vmatprep.subr.mxu0 0.0
      %1086 = vmatpush1.msra.mxu0 0.0
      %1087 = vmatprep.subr.mxu0 0.0
      %1088 = vmatpush1.msra.mxu0 0.0
      %1089 = vmatprep.subr.mxu0 0.0
      %1090 = vmatpush1.msra.mxu0 0.0
      %1091 = vmatprep.mubr.f32.mxu0 0.0
      %1092 = vmatmul.mubr.f32.gmra.mrb[0].mxu0 %v1025
      %v1093 = vpop.f32.mrb[0].mxu0
      %v1094 = vadd.f32 0.0, %v1093
      %v1095 = vpop.f32.mrb[0].mxu0
      %1096 = vdwg.mxu0
      %v1098 = vsel %vm238, %v947, 0
      %1100 = vmatprep.subr.mxu0 0.0
      %1101 = vmatpush1.msra.mxu0 %v228
      %1102 = vmatprep.subr.mxu0 0.0
      %1103 = vmatpush1.msra.mxu0 %v229
      %1104 = vmatprep.subr.mxu0 0.0
      %1105 = vmatpush1.msra.mxu0 %v230
      %1106 = vmatprep.subr.mxu0 0.0
      %1107 = vmatpush1.msra.mxu0 %v231
      %1108 = vmatprep.subr.mxu0 0.0
      %1109 = vmatpush1.msra.mxu0 0.0
      %1110 = vmatprep.subr.mxu0 0.0
      %1111 = vmatpush1.msra.mxu0 0.0
      %1112 = vmatprep.subr.mxu0 0.0
      %1113 = vmatpush1.msra.mxu0 0.0
      %1114 = vmatprep.subr.mxu0 0.0
      %1115 = vmatpush1.msra.mxu0 0.0
      %1116 = vmatprep.subr.mxu0 0.0
      %1117 = vmatpush1.msra.mxu0 0.0
      %1118 = vmatprep.subr.mxu0 0.0
      %1119 = vmatpush1.msra.mxu0 0.0
      %1120 = vmatprep.subr.mxu0 0.0
      %1121 = vmatpush1.msra.mxu0 0.0
      %1122 = vmatprep.subr.mxu0 0.0
      %1123 = vmatpush1.msra.mxu0 0.0
      %1124 = vmatprep.subr.mxu0 0.0
      %1125 = vmatpush1.msra.mxu0 0.0
      %1126 = vmatprep.subr.mxu0 0.0
      %1127 = vmatpush1.msra.mxu0 0.0
      %1128 = vmatprep.subr.mxu0 0.0
      %1129 = vmatpush1.msra.mxu0 0.0
      %1130 = vmatprep.subr.mxu0 0.0
      %1131 = vmatpush1.msra.mxu0 0.0
      %1132 = vmatprep.subr.mxu0 0.0
      %1133 = vmatpush1.msra.mxu0 0.0
      %1134 = vmatprep.subr.mxu0 0.0
      %1135 = vmatpush1.msra.mxu0 0.0
      %1136 = vmatprep.subr.mxu0 0.0
      %1137 = vmatpush1.msra.mxu0 0.0
      %1138 = vmatprep.subr.mxu0 0.0
      %1139 = vmatpush1.msra.mxu0 0.0
      %1140 = vmatprep.subr.mxu0 0.0
      %1141 = vmatpush1.msra.mxu0 0.0
      %1142 = vmatprep.subr.mxu0 0.0
      %1143 = vmatpush1.msra.mxu0 0.0
      %1144 = vmatprep.subr.mxu0 0.0
      %1145 = vmatpush1.msra.mxu0 0.0
      %1146 = vmatprep.subr.mxu0 0.0
      %1147 = vmatpush1.msra.mxu0 0.0
      %1148 = vmatprep.subr.mxu0 0.0
      %1149 = vmatpush1.msra.mxu0 0.0
      %1150 = vmatprep.subr.mxu0 0.0
      %1151 = vmatpush1.msra.mxu0 0.0
      %1152 = vmatprep.subr.mxu0 0.0
      %1153 = vmatpush1.msra.mxu0 0.0
      %1154 = vmatprep.subr.mxu0 0.0
      %1155 = vmatpush1.msra.mxu0 0.0
      %1156 = vmatprep.subr.mxu0 0.0
      %1157 = vmatpush1.msra.mxu0 0.0
      %1158 = vmatprep.subr.mxu0 0.0
      %1159 = vmatpush1.msra.mxu0 0.0
      %1160 = vmatprep.subr.mxu0 0.0
      %1161 = vmatpush1.msra.mxu0 0.0
      %1162 = vmatprep.subr.mxu0 0.0
      %1163 = vmatpush1.msra.mxu0 0.0
      %1164 = vmatprep.mubr.f32.mxu0 0.0
      %1165 = vmatmul.mubr.f32.gmra.mrb[0].mxu0 %v1098
      %v1166 = vpop.f32.mrb[0].mxu0
      %v1167 = vadd.f32 %v1094, %v1166
      %v1168 = vpop.f32.mrb[0].mxu0
      %1169 = vdwg.mxu0
      %v1170 = vadd.f32 %v1167, %v538
      %v1171 = vmul.f32 %v1170, %v1170
      %v1172 = vsel %vm238, %v1171, 0.0
      %1173 = vadd.xlane.f32.xlu0 %v1172
      %v1174 = vpop.xlane.xlu0 %1173
      %v1175 = vrot.slane %v1174, 4
      %v1176 = vadd.f32 %v1174, %v1175
      %v1177 = vrot.slane %v1176, 2
      %v1178 = vadd.f32 %v1176, %v1177
      %v1179 = vrot.slane %v1178, 1
      %v1180 = vadd.f32 %v1178, %v1179
      %s1181 = vtos %v1180
      %v1182 = vstv %s1181
      %v1183 = vrsqrt.pop %v1182
      %s1184 = vtos %v1183
      %v1185 = vstv %s1184
      %v1186 = vmul.f32 %v1170, %v1185
      %s1187 = scalar_lea.vmem %s208, 24
      %v1188 = vld [vmem:[%s1187] sm:$0xff]
      %v1190 = vsel %vm238, %v1188, 0
      %1192 = vmatprep.subr.mxu0 0.0
      %1193 = vmatpush1.msra.mxu0 %v220
      %1194 = vmatprep.subr.mxu0 0.0
      %1195 = vmatpush1.msra.mxu0 %v221
      %1196 = vmatprep.subr.mxu0 0.0
      %1197 = vmatpush1.msra.mxu0 %v222
      %1198 = vmatprep.subr.mxu0 0.0
      %1199 = vmatpush1.msra.mxu0 %v223
      %1200 = vmatprep.subr.mxu0 0.0
      %1201 = vmatpush1.msra.mxu0 0.0
      %1202 = vmatprep.subr.mxu0 0.0
      %1203 = vmatpush1.msra.mxu0 0.0
      %1204 = vmatprep.subr.mxu0 0.0
      %1205 = vmatpush1.msra.mxu0 0.0
      %1206 = vmatprep.subr.mxu0 0.0
      %1207 = vmatpush1.msra.mxu0 0.0
      %1208 = vmatprep.subr.mxu0 0.0
      %1209 = vmatpush1.msra.mxu0 0.0
      %1210 = vmatprep.subr.mxu0 0.0
      %1211 = vmatpush1.msra.mxu0 0.0
      %1212 = vmatprep.subr.mxu0 0.0
      %1213 = vmatpush1.msra.mxu0 0.0
      %1214 = vmatprep.subr.mxu0 0.0
      %1215 = vmatpush1.msra.mxu0 0.0
      %1216 = vmatprep.subr.mxu0 0.0
      %1217 = vmatpush1.msra.mxu0 0.0
      %1218 = vmatprep.subr.mxu0 0.0
      %1219 = vmatpush1.msra.mxu0 0.0
      %1220 = vmatprep.subr.mxu0 0.0
      %1221 = vmatpush1.msra.mxu0 0.0
      %1222 = vmatprep.subr.mxu0 0.0
      %1223 = vmatpush1.msra.mxu0 0.0
      %1224 = vmatprep.subr.mxu0 0.0
      %1225 = vmatpush1.msra.mxu0 0.0
      %1226 = vmatprep.subr.mxu0 0.0
      %1227 = vmatpush1.msra.mxu0 0.0
      %1228 = vmatprep.subr.mxu0 0.0
      %1229 = vmatpush1.msra.mxu0 0.0
      %1230 = vmatprep.subr.mxu0 0.0
      %1231 = vmatpush1.msra.mxu0 0.0
      %1232 = vmatprep.subr.mxu0 0.0
      %1233 = vmatpush1.msra.mxu0 0.0
      %1234 = vmatprep.subr.mxu0 0.0
      %1235 = vmatpush1.msra.mxu0 0.0
      %1236 = vmatprep.subr.mxu0 0.0
      %1237 = vmatpush1.msra.mxu0 0.0
      %1238 = vmatprep.subr.mxu0 0.0
      %1239 = vmatpush1.msra.mxu0 0.0
      %1240 = vmatprep.subr.mxu0 0.0
      %1241 = vmatpush1.msra.mxu0 0.0
      %1242 = vmatprep.subr.mxu0 0.0
      %1243 = vmatpush1.msra.mxu0 0.0
      %1244 = vmatprep.subr.mxu0 0.0
      %1245 = vmatpush1.msra.mxu0 0.0
      %1246 = vmatprep.subr.mxu0 0.0
      %1247 = vmatpush1.msra.mxu0 0.0
      %1248 = vmatprep.subr.mxu0 0.0
      %1249 = vmatpush1.msra.mxu0 0.0
      %1250 = vmatprep.subr.mxu0 0.0
      %1251 = vmatpush1.msra.mxu0 0.0
      %1252 = vmatprep.subr.mxu0 0.0
      %1253 = vmatpush1.msra.mxu0 0.0
      %1254 = vmatprep.subr.mxu0 0.0
      %1255 = vmatpush1.msra.mxu0 0.0
      %1256 = vmatprep.mubr.f32.mxu0 0.0
      %1257 = vmatmul.mubr.f32.gmra.mrb[0].mxu0 %v1190
      %v1258 = vpop.f32.mrb[0].mxu0
      %v1259 = vadd.f32 0.0, %v1258
      %v1260 = vpop.f32.mrb[0].mxu0
      %1261 = vdwg.mxu0
      %v1262 = vtanh.pop %v1259
      %s1263 = scalar_lea.vmem %s214, 24
      %v1264 = vld [vmem:[%s1263] sm:$0xff]
      %v1266 = vsel %vm238, %v1264, 0
      %1268 = vmatprep.subr.mxu0 0.0
      %1269 = vmatpush1.msra.mxu0 %v224
      %1270 = vmatprep.subr.mxu0 0.0
      %1271 = vmatpush1.msra.mxu0 %v225
      %1272 = vmatprep.subr.mxu0 0.0
      %1273 = vmatpush1.msra.mxu0 %v226
      %1274 = vmatprep.subr.mxu0 0.0
      %1275 = vmatpush1.msra.mxu0 %v227
      %1276 = vmatprep.subr.mxu0 0.0
      %1277 = vmatpush1.msra.mxu0 0.0
      %1278 = vmatprep.subr.mxu0 0.0
      %1279 = vmatpush1.msra.mxu0 0.0
      %1280 = vmatprep.subr.mxu0 0.0
      %1281 = vmatpush1.msra.mxu0 0.0
      %1282 = vmatprep.subr.mxu0 0.0
      %1283 = vmatpush1.msra.mxu0 0.0
      %1284 = vmatprep.subr.mxu0 0.0
      %1285 = vmatpush1.msra.mxu0 0.0
      %1286 = vmatprep.subr.mxu0 0.0
      %1287 = vmatpush1.msra.mxu0 0.0
      %1288 = vmatprep.subr.mxu0 0.0
      %1289 = vmatpush1.msra.mxu0 0.0
      %1290 = vmatprep.subr.mxu0 0.0
      %1291 = vmatpush1.msra.mxu0 0.0
      %1292 = vmatprep.subr.mxu0 0.0
      %1293 = vmatpush1.msra.mxu0 0.0
      %1294 = vmatprep.subr.mxu0 0.0
      %1295 = vmatpush1.msra.mxu0 0.0
      %1296 = vmatprep.subr.mxu0 0.0
      %1297 = vmatpush1.msra.mxu0 0.0
      %1298 = vmatprep.subr.mxu0 0.0
      %1299 = vmatpush1.msra.mxu0 0.0
      %1300 = vmatprep.subr.mxu0 0.0
      %1301 = vmatpush1.msra.mxu0 0.0
      %1302 = vmatprep.subr.mxu0 0.0
      %1303 = vmatpush1.msra.mxu0 0.0
      %1304 = vmatprep.subr.mxu0 0.0
      %1305 = vmatpush1.msra.mxu0 0.0
      %1306 = vmatprep.subr.mxu0 0.0
      %1307 = vmatpush1.msra.mxu0 0.0
      %1308 = vmatprep.subr.mxu0 0.0
      %1309 = vmatpush1.msra.mxu0 0.0
      %1310 = vmatprep.subr.mxu0 0.0
      %1311 = vmatpush1.msra.mxu0 0.0
      %1312 = vmatprep.subr.mxu0 0.0
      %1313 = vmatpush1.msra.mxu0 0.0
      %1314 = vmatprep.subr.mxu0 0.0
      %1315 = vmatpush1.msra.mxu0 0.0
      %1316 = vmatprep.subr.mxu0 0.0
      %1317 = vmatpush1.msra.mxu0 0.0
      %1318 = vmatprep.subr.mxu0 0.0
      %1319 = vmatpush1.msra.mxu0 0.0
      %1320 = vmatprep.subr.mxu0 0.0
      %1321 = vmatpush1.msra.mxu0 0.0
      %1322 = vmatprep.subr.mxu0 0.0
      %1323 = vmatpush1.msra.mxu0 0.0
      %1324 = vmatprep.subr.mxu0 0.0
      %1325 = vmatpush1.msra.mxu0 0.0
      %1326 = vmatprep.subr.mxu0 0.0
      %1327 = vmatpush1.msra.mxu0 0.0
      %1328 = vmatprep.subr.mxu0 0.0
      %1329 = vmatpush1.msra.mxu0 0.0
      %1330 = vmatprep.subr.mxu0 0.0
      %1331 = vmatpush1.msra.mxu0 0.0
      %1332 = vmatprep.mubr.f32.mxu0 0.0
      %1333 = vmatmul.mubr.f32.gmra.mrb[0].mxu0 %v1266
      %v1334 = vpop.f32.mrb[0].mxu0
      %v1335 = vadd.f32 0.0, %v1334
      %v1336 = vpop.f32.mrb[0].mxu0
      %1337 = vdwg.mxu0
      %v1338 = vtanh.pop %v1335
      %v1340 = vsel %vm238, %v1338, 0
      %1342 = vmatprep.subr.mxu0 0.0
      %1343 = vmatpush1.msra.mxu0 %v232
      %1344 = vmatprep.subr.mxu0 0.0
      %1345 = vmatpush1.msra.mxu0 %v233
      %1346 = vmatprep.subr.mxu0 0.0
      %1347 = vmatpush1.msra.mxu0 %v234
      %1348 = vmatprep.subr.mxu0 0.0
      %1349 = vmatpush1.msra.mxu0 %v235
      %1350 = vmatprep.subr.mxu0 0.0
      %1351 = vmatpush1.msra.mxu0 0.0
      %1352 = vmatprep.subr.mxu0 0.0
      %1353 = vmatpush1.msra.mxu0 0.0
      %1354 = vmatprep.subr.mxu0 0.0
      %1355 = vmatpush1.msra.mxu0 0.0
      %1356 = vmatprep.subr.mxu0 0.0
      %1357 = vmatpush1.msra.mxu0 0.0
      %1358 = vmatprep.subr.mxu0 0.0
      %1359 = vmatpush1.msra.mxu0 0.0
      %1360 = vmatprep.subr.mxu0 0.0
      %1361 = vmatpush1.msra.mxu0 0.0
      %1362 = vmatprep.subr.mxu0 0.0
      %1363 = vmatpush1.msra.mxu0 0.0
      %1364 = vmatprep.subr.mxu0 0.0
      %1365 = vmatpush1.msra.mxu0 0.0
      %1366 = vmatprep.subr.mxu0 0.0
      %1367 = vmatpush1.msra.mxu0 0.0
      %1368 = vmatprep.subr.mxu0 0.0
      %1369 = vmatpush1.msra.mxu0 0.0
      %1370 = vmatprep.subr.mxu0 0.0
      %1371 = vmatpush1.msra.mxu0 0.0
      %1372 = vmatprep.subr.mxu0 0.0
      %1373 = vmatpush1.msra.mxu0 0.0
      %1374 = vmatprep.subr.mxu0 0.0
      %1375 = vmatpush1.msra.mxu0 0.0
      %1376 = vmatprep.subr.mxu0 0.0
      %1377 = vmatpush1.msra.mxu0 0.0
      %1378 = vmatprep.subr.mxu0 0.0
      %1379 = vmatpush1.msra.mxu0 0.0
      %1380 = vmatprep.subr.mxu0 0.0
      %1381 = vmatpush1.msra.mxu0 0.0
      %1382 = vmatprep.subr.mxu0 0.0
      %1383 = vmatpush1.msra.mxu0 0.0
      %1384 = vmatprep.subr.mxu0 0.0
      %1385 = vmatpush1.msra.mxu0 0.0
      %1386 = vmatprep.subr.mxu0 0.0
      %1387 = vmatpush1.msra.mxu0 0.0
      %1388 = vmatprep.subr.mxu0 0.0
      %1389 = vmatpush1.msra.mxu0 0.0
      %1390 = vmatprep.subr.mxu0 0.0
      %1391 = vmatpush1.msra.mxu0 0.0
      %1392 = vmatprep.subr.mxu0 0.0
      %1393 = vmatpush1.msra.mxu0 0.0
      %1394 = vmatprep.subr.mxu0 0.0
      %1395 = vmatpush1.msra.mxu0 0.0
      %1396 = vmatprep.subr.mxu0 0.0
      %1397 = vmatpush1.msra.mxu0 0.0
      %1398 = vmatprep.subr.mxu0 0.0
      %1399 = vmatpush1.msra.mxu0 0.0
      %1400 = vmatprep.subr.mxu0 0.0
      %1401 = vmatpush1.msra.mxu0 0.0
      %1402 = vmatprep.subr.mxu0 0.0
      %1403 = vmatpush1.msra.mxu0 0.0
      %1404 = vmatprep.subr.mxu0 0.0
      %1405 = vmatpush1.msra.mxu0 0.0
      %1406 = vmatprep.mubr.f32.mxu0 0.0
      %1407 = vmatmul.mubr.f32.gmra.mrb[0].mxu0 %v1340
      %v1408 = vpop.f32.mrb[0].mxu0
      %v1409 = vadd.f32 0.0, %v1408
      %v1410 = vpop.f32.mrb[0].mxu0
      %1411 = vdwg.mxu0
      %v1413 = vsel %vm238, %v1262, 0
      %1415 = vmatprep.subr.mxu0 0.0
      %1416 = vmatpush1.msra.mxu0 %v228
      %1417 = vmatprep.subr.mxu0 0.0
      %1418 = vmatpush1.msra.mxu0 %v229
      %1419 = vmatprep.subr.mxu0 0.0
      %1420 = vmatpush1.msra.mxu0 %v230
      %1421 = vmatprep.subr.mxu0 0.0
      %1422 = vmatpush1.msra.mxu0 %v231
      %1423 = vmatprep.subr.mxu0 0.0
      %1424 = vmatpush1.msra.mxu0 0.0
      %1425 = vmatprep.subr.mxu0 0.0
      %1426 = vmatpush1.msra.mxu0 0.0
      %1427 = vmatprep.subr.mxu0 0.0
      %1428 = vmatpush1.msra.mxu0 0.0
      %1429 = vmatprep.subr.mxu0 0.0
      %1430 = vmatpush1.msra.mxu0 0.0
      %1431 = vmatprep.subr.mxu0 0.0
      %1432 = vmatpush1.msra.mxu0 0.0
      %1433 = vmatprep.subr.mxu0 0.0
      %1434 = vmatpush1.msra.mxu0 0.0
      %1435 = vmatprep.subr.mxu0 0.0
      %1436 = vmatpush1.msra.mxu0 0.0
      %1437 = vmatprep.subr.mxu0 0.0
      %1438 = vmatpush1.msra.mxu0 0.0
      %1439 = vmatprep.subr.mxu0 0.0
      %1440 = vmatpush1.msra.mxu0 0.0
      %1441 = vmatprep.subr.mxu0 0.0
      %1442 = vmatpush1.msra.mxu0 0.0
      %1443 = vmatprep.subr.mxu0 0.0
      %1444 = vmatpush1.msra.mxu0 0.0
      %1445 = vmatprep.subr.mxu0 0.0
      %1446 = vmatpush1.msra.mxu0 0.0
      %1447 = vmatprep.subr.mxu0 0.0
      %1448 = vmatpush1.msra.mxu0 0.0
      %1449 = vmatprep.subr.mxu0 0.0
      %1450 = vmatpush1.msra.mxu0 0.0
      %1451 = vmatprep.subr.mxu0 0.0
      %1452 = vmatpush1.msra.mxu0 0.0
      %1453 = vmatprep.subr.mxu0 0.0
      %1454 = vmatpush1.msra.mxu0 0.0
      %1455 = vmatprep.subr.mxu0 0.0
      %1456 = vmatpush1.msra.mxu0 0.0
      %1457 = vmatprep.subr.mxu0 0.0
      %1458 = vmatpush1.msra.mxu0 0.0
      %1459 = vmatprep.subr.mxu0 0.0
      %1460 = vmatpush1.msra.mxu0 0.0
      %1461 = vmatprep.subr.mxu0 0.0
      %1462 = vmatpush1.msra.mxu0 0.0
      %1463 = vmatprep.subr.mxu0 0.0
      %1464 = vmatpush1.msra.mxu0 0.0
      %1465 = vmatprep.subr.mxu0 0.0
      %1466 = vmatpush1.msra.mxu0 0.0
      %1467 = vmatprep.subr.mxu0 0.0
      %1468 = vmatpush1.msra.mxu0 0.0
      %1469 = vmatprep.subr.mxu0 0.0
      %1470 = vmatpush1.msra.mxu0 0.0
      %1471 = vmatprep.subr.mxu0 0.0
      %1472 = vmatpush1.msra.mxu0 0.0
      %1473 = vmatprep.subr.mxu0 0.0
      %1474 = vmatpush1.msra.mxu0 0.0
      %1475 = vmatprep.subr.mxu0 0.0
      %1476 = vmatpush1.msra.mxu0 0.0
      %1477 = vmatprep.subr.mxu0 0.0
      %1478 = vmatpush1.msra.mxu0 0.0
      %1479 = vmatprep.mubr.f32.mxu0 0.0
      %1480 = vmatmul.mubr.f32.gmra.mrb[0].mxu0 %v1413
      %v1481 = vpop.f32.mrb[0].mxu0
      %v1482 = vadd.f32 %v1409, %v1481
      %v1483 = vpop.f32.mrb[0].mxu0
      %1484 = vdwg.mxu0
      %v1485 = vadd.f32 %v1482, %v538
      %v1486 = vmul.f32 %v1485, %v1485
      %v1487 = vsel %vm238, %v1486, 0.0
      %1488 = vadd.xlane.f32.xlu0 %v1487
      %v1489 = vpop.xlane.xlu0 %1488
      %v1490 = vrot.slane %v1489, 4
      %v1491 = vadd.f32 %v1489, %v1490
      %v1492 = vrot.slane %v1491, 2
      %v1493 = vadd.f32 %v1491, %v1492
      %v1494 = vrot.slane %v1493, 1
      %v1495 = vadd.f32 %v1493, %v1494
      %s1496 = vtos %v1495
      %v1497 = vstv %s1496
      %v1498 = vrsqrt.pop %v1497
      %s1499 = vtos %v1498
      %v1500 = vstv %s1499
      %v1501 = vmul.f32 %v1485, %v1500
      %1503 = vrot.lane.b32.xlu0 %v871, 32
      %v1504 = vpop.permute.xlu0 %1503
      %1507 = vrot.lane.b32.xlu0 %v1186, 64
      %v1508 = vpop.permute.xlu0 %1507
      %1511 = vrot.lane.b32.xlu0 %v1501, 96
      %v1512 = vpop.permute.xlu0 %1511
      %v1514 = vsel %vm238, %v556, %v1504
      %vm1515 = vcmask 523264
      %v1516 = vsel %vm1515, %v1514, %v1508
      %vm1517 = vcmask 785408
      %v1518 = vsel %vm1517, %v1516, %v1512
      %1519 = vst [vmem:[%s219] sm:$0xff] %v1518
      %p1520 = scmp.lt.s32.totalorder %s15, 1
      %s1521 = scalar_select %p1520, %s15, 1
      %s1522 = smul.addr %s1521, 8
      %s1523 = scalar_lea.vmem %s4, %s1522
      // Predicated region
      $region37: #{graph_comb_forward.1} parent=35 // pred_check
        %p1524 = pneg %p127
      $region38: #{graph_comb_forward.1} parent=35 // pred_check_branch
        %1526 = sbr.rel (%p1524) target = $region40
      $region39: #{graph_comb_forward.1} parent=35 // pred_region
        _
      $region40: #{graph_comb_forward.1} parent=35 // pred_fallthru
        _
    $region36: #{graph_comb_forward.1} parent=5 // pred_fallthru
      _
    %p1527 = scmp.le.s32.totalorder 2, %s10
    // Predicated region
    $region41: #{graph_comb_forward.1} parent=5 // pred_check
      %p1528 = pneg %p1527
    $region42: #{graph_comb_forward.1} parent=5 // pred_check_branch
      %1530 = sbr.rel (%p1528) target = $region44
    $region43: #{graph_comb_forward.1} parent=5 // pred_region
      %s1531 = ssub.s32 %s10, 2
      // Predicated region
      $region45: #{graph_comb_forward.1} parent=43 // pred_check
        %p1532 = pneg %p133
      $region46: #{graph_comb_forward.1} parent=43 // pred_check_branch
        %1534 = sbr.rel (%p1532) target = $region48
      $region47: #{graph_comb_forward.1} parent=43 // pred_region
        %p1535 = scmp.lt.s32.totalorder %s16, 1
        %s1536 = scalar_select %p1535, %s16, 1
        %s1537 = smul.addr %s1536, 8
        %s1538 = scalar_lea.vmem %s4, %s1537
      $region48: #{graph_comb_forward.1} parent=43 // pred_fallthru
        _
    $region44: #{graph_comb_forward.1} parent=5 // pred_fallthru
      _
  $region6: #{graph_comb_forward.1} parent=0 // loop_footer
    %s14 = sadd.s32 1, %s10
  $region7: #{graph_comb_forward.1} parent=0 // loop_footer_branch
    %9 = sbr.rel target = $region3
  $region8: #{graph_comb_forward.1} parent=0 // loop_exit
    _

</llo_original>
